<compile_context>
chip_gen: v6e
topology: v6e:2x2x1
jax: 0.10.0
libtpu: 0.0.40
codegen_flags: <defaults>
</compile_context>

<pallas_src>
import functools

import numpy as np
import jax
import jax.numpy as jnp
from jax.experimental import pallas as pl
from jax.experimental.pallas import tpu as pltpu


def _round_up(x, m):
    return ((x + m - 1) // m) * m


def _vmem_capacity_bytes():
    try:
        return int(pltpu.get_tpu_info().vmem_capacity_bytes)
    except Exception:
        return 64 * 2**20  # conservative fallback (v7x physical per-TC VMEM)


def _const_spec(shape):
    """Grid-invariant operand: resident in VMEM, single-buffered if supported."""
    idx = lambda i: (0,) * len(shape)
    if hasattr(pl, "Buffered"):
        try:
            return pl.BlockSpec(shape, idx, pipeline_mode=pl.Buffered(1))
        except TypeError:
            pass
    return pl.BlockSpec(shape, idx)


# --------------------------------------------------------------------------
# Pallas kernel: fused bottleneck 1x1-conv (BN folded) + ReLU + final 1x1-conv
# The concat over channels is expressed as a sum of 5 matmuls (4 stage slabs
# + feats slab), so no concatenated tensor is ever materialized in HBM.
# --------------------------------------------------------------------------
def _psp_head_kernel(u0_ref, u1_ref, u2_ref, u3_ref, f_ref,
                     w0_ref, w1_ref, w2_ref, w3_ref, wf_ref,
                     shift_ref, wfin_ref, bfin_ref, o_ref):
    acc = jnp.dot(u0_ref[...], w0_ref[...], preferred_element_type=jnp.float32)
    acc = acc + jnp.dot(u1_ref[...], w1_ref[...], preferred_element_type=jnp.float32)
    acc = acc + jnp.dot(u2_ref[...], w2_ref[...], preferred_element_type=jnp.float32)
    acc = acc + jnp.dot(u3_ref[...], w3_ref[...], preferred_element_type=jnp.float32)
    acc = acc + jnp.dot(f_ref[...], wf_ref[...], preferred_element_type=jnp.float32)
    # folded BatchNorm shift + ReLU (the module's second ReLU is a no-op).
    bottle = jnp.maximum(acc + shift_ref[...], 0.0)
    # final 1x1 conv with bias (lane-padded to a multiple of 128).
    out = jnp.dot(bottle.astype(wfin_ref.dtype), wfin_ref[...],
                  preferred_element_type=jnp.float32) + bfin_ref[...]
    o_ref[...] = out.astype(o_ref.dtype)


def psp_head_pallas(ups_streams, feats_mc, wb_stages, wb_feats, shift,
                    w_final, b_final, *, out_dtype=jnp.bfloat16,
                    tile_m=None, vmem_limit_bytes=None):
    """Fused PSP head over (pixels, channels) data.

    ups_streams : 4 x (M, C/4)   upsampled stage activations (compute dtype)
    feats_mc    : (M, C)         backbone features, channels-last flattened
    wb_stages   : 4 x (C/4, Cout) bottleneck weight slabs (BN scale folded in)
    wb_feats    : (C, Cout)      bottleneck weight slab for the feats half
    shift       : (1, Cout)      folded BN shift (f32)
    w_final     : (Cout, Npad)   final 1x1 conv weight, lane-padded
    b_final     : (1, Npad)      final 1x1 conv bias, lane-padded (f32)
    Returns (M, Npad) in out_dtype; caller slices [:, :ncls].
    """
    M, C = feats_mc.shape
    c4 = ups_streams[0].shape[1]
    Cout = wb_feats.shape[1]
    npad = w_final.shape[1]
    a = jnp.dtype(feats_mc.dtype).itemsize
    out_a = jnp.dtype(out_dtype).itemsize

    vmem_cap = _vmem_capacity_bytes()
    if tile_m is None:
        # 128-MiB-VMEM parts (v5e/v6e) take bigger tiles; v7x (64 MiB) smaller.
        tile_m = 1024 if vmem_cap >= 96 * 2**20 else 512
        # Keep >= ~8 grid steps so megacore split + pipelining stay effective.
        while tile_m > 256 and pl.cdiv(M, tile_m) < 8:
            tile_m //= 2
    tile_m = max(8, _round_up(min(int(tile_m), _round_up(M, 8)), 8))

    if vmem_limit_bytes is None:
        acts = 2 * tile_m * (4 * c4 + C) * a               # double-buffered act tiles
        outs = 2 * tile_m * npad * out_a                   # double-buffered out tiles
        weights = ((4 * c4 + C) * Cout + Cout * npad) * a \
            + (Cout + npad) * 4                            # resident (single-buffered)
        vmem_limit_bytes = int(min(int(0.8 * vmem_cap),
                                   acts + outs + weights + (4 << 20)))
        vmem_limit_bytes = max(vmem_limit_bytes, 8 << 20)

    grid = (pl.cdiv(M, tile_m),)   # ragged last tile handled by Pallas masking

    def act_spec(c):
        return pl.BlockSpec((tile_m, c), lambda i: (i, 0))

    in_specs = (
        [act_spec(c4)] * 4                      # 4 upsampled stage streams
        + [act_spec(C)]                         # feats stream
        + [_const_spec((c4, Cout))] * 4         # bottleneck W slabs (BN-scaled)
        + [_const_spec((C, Cout)),              # bottleneck W (feats half)
           _const_spec((1, Cout)),              # folded BN shift
           _const_spec((Cout, npad)),           # final conv W (lane-padded)
           _const_spec((1, npad))]              # final conv bias (lane-padded)
    )

    return pl.pallas_call(
        _psp_head_kernel,
        out_shape=jax.ShapeDtypeStruct((M, npad), out_dtype),
        grid_spec=pltpu.PrefetchScalarGridSpec(
            num_scalar_prefetch=0,
            grid=grid,
            in_specs=in_specs,
            out_specs=pl.BlockSpec((tile_m, npad), lambda i: (i, 0)),
        ),
        compiler_params=pltpu.CompilerParams(
            dimension_semantics=("parallel",),
            vmem_limit_bytes=vmem_limit_bytes),
    )(*ups_streams, feats_mc, *wb_stages, wb_feats, shift, w_final, b_final)


# --------------------------------------------------------------------------
# Plain-JAX glue matching exact PyTorch semantics (tiny per-stage work)
# --------------------------------------------------------------------------
def _adaptive_pool_matrix(in_size, out_size):
    """Row i averages input indices [floor(i*in/out), ceil((i+1)*in/out))."""
    m = np.zeros((out_size, in_size), np.float32)
    for i in range(out_size):
        start = (i * in_size) // out_size
        end = -((-(i + 1) * in_size) // out_size)  # ceil
        m[i, start:end] = 1.0 / float(end - start)
    return m


def _bilinear_matrix(out_size, in_size, align_corners=False):
    """1-D bilinear interpolation weights (F.upsample, mode='bilinear').

    Default matches modern PyTorch (align_corners=False); set True for the
    legacy F.upsample default used by very old PSPNet checkpoints.
    """
    m = np.zeros((out_size, in_size), np.float32)
    for d in range(out_size):
        if align_corners:
            src = 0.0 if out_size == 1 else d * (in_size - 1) / (out_size - 1)
        else:
            src = max((in_size / out_size) * (d + 0.5) - 0.5, 0.0)
        i0 = min(int(np.floor(src)), in_size - 1)
        lam = src - i0
        i1 = min(i0 + 1, in_size - 1)
        m[d, i0] += 1.0 - lam
        m[d, i1] += lam
    return m


def _bn_eval(x_nchw, gamma, beta, mean, var, eps=1e-5):
    inv = gamma / jnp.sqrt(var + eps)
    return (x_nchw - mean[None, :, None, None]) * inv[None, :, None, None] \
        + beta[None, :, None, None]


def init_psp_params(key, in_features, out_features, sizes, n_classes):
    c4 = in_features // 4
    keys = iter(jax.random.split(key, 5 * len(sizes) + 8))
    stages = []
    for _ in sizes:
        stages.append(dict(
            conv_w=0.1 * jax.random.normal(next(keys), (c4, in_features), jnp.float32),
            bn_gamma=1.0 + 0.1 * jax.random.normal(next(keys), (c4,), jnp.float32),
            bn_beta=0.1 * jax.random.normal(next(keys), (c4,), jnp.float32),
            bn_mean=0.1 * jax.random.normal(next(keys), (c4,), jnp.float32),
            bn_var=1.0 + 0.1 * jnp.abs(jax.random.normal(next(keys), (c4,), jnp.float32)),
        ))
    cat_c = in_features * (len(sizes) // 4 + 1)
    params = dict(
        stages=stages,
        bottleneck=dict(
            conv_w=0.1 * jax.random.normal(next(keys), (out_features, cat_c), jnp.float32),
            bn_gamma=1.0 + 0.1 * jax.random.normal(next(keys), (out_features,), jnp.float32),
            bn_beta=0.1 * jax.random.normal(next(keys), (out_features,), jnp.float32),
            bn_mean=0.1 * jax.random.normal(next(keys), (out_features,), jnp.float32),
            bn_var=1.0 + 0.1 * jnp.abs(jax.random.normal(next(keys), (out_features,), jnp.float32)),
        ),
        final=dict(
            w=0.1 * jax.random.normal(next(keys), (n_classes, out_features), jnp.float32),
            b=0.1 * jax.random.normal(next(keys), (n_classes,), jnp.float32),
        ),
    )
    return params


def psp_module_forward(params, feats_nchw, sizes=(1, 2, 3, 6), eps=1e-5,
                       align_corners=False, compute_dtype=jnp.bfloat16,
                       tile_m=None):
    N, C, H, W = feats_nchw.shape
    assert C % 4 == 0 and len(sizes) == 4
    c4 = C // 4
    M = N * H * W

    # Per-stage: adaptive pool -> 1x1 conv -> BN -> ReLU (tiny, f32) ->
    # bilinear upsample done in compute dtype, emitting channels-last directly
    # (no NCHW->NHWC rewrite and no channel concat of the big activations).
    ups_streams = []
    for k, s in enumerate(sizes):
        Ph = jnp.asarray(_adaptive_pool_matrix(H, s))
        Pw = jnp.asarray(_adaptive_pool_matrix(W, s))
        pooled = jnp.einsum('ph,nchw,qw->ncpq', Ph, feats_nchw, Pw)
        p = params['stages'][k]
        y = jnp.einsum('oc,ncpq->nopq', p['conv_w'], pooled)
        y = _bn_eval(y, p['bn_gamma'], p['bn_beta'], p['bn_mean'], p['bn_var'], eps)
        y = jnp.maximum(y, 0.0).astype(compute_dtype)
        Uh = jnp.asarray(_bilinear_matrix(H, s, align_corners)).astype(compute_dtype)
        Uw = jnp.asarray(_bilinear_matrix(W, s, align_corners)).astype(compute_dtype)
        up = jnp.einsum('hp,nopq,wq->nhwo', Uh, y, Uw)       # (N, H, W, C//4)
        ups_streams.append(up.reshape(M, c4))

    # feats stream: cast to compute dtype first so NCHW->NHWC moves half bytes.
    feats_mc = jnp.transpose(feats_nchw.astype(compute_dtype),
                             (0, 2, 3, 1)).reshape(M, C)

    # Fold eval-mode BN into the bottleneck conv weights; keep only the shift.
    # PyTorch concat order is [stage0, stage1, stage2, stage3, feats].
    bp = params['bottleneck']
    Wb = bp['conv_w']                                       # (Cout, 2C)
    Cout = Wb.shape[0]
    scale = bp['bn_gamma'] / jnp.sqrt(bp['bn_var'] + eps)   # (Cout,)
    shift = (bp['bn_beta'] - bp['bn_mean'] * scale).reshape(1, Cout).astype(jnp.float32)
    Wb_t = jnp.transpose(Wb) * scale[None, :]               # (2C, Cout)
    wb_stages = [Wb_t[k * c4:(k + 1) * c4, :].astype(compute_dtype) for k in range(4)]
    wb_feats = Wb_t[C:, :].astype(compute_dtype)

    # Lane-dense final conv: pad n_classes up to a multiple of 128.
    Wf = params['final']['w']                               # (ncls, Cout)
    bf = params['final']['b']                               # (ncls,)
    ncls = Wf.shape[0]
    npad = _round_up(ncls, 128)
    w_final = jnp.zeros((Cout, npad), compute_dtype).at[:, :ncls].set(
        jnp.transpose(Wf).astype(compute_dtype))
    b_final = jnp.zeros((1, npad), jnp.float32).at[:, :ncls].set(
        bf[None, :].astype(jnp.float32))

    out_mc = psp_head_pallas(ups_streams, feats_mc, wb_stages, wb_feats, shift,
                             w_final, b_final, out_dtype=compute_dtype,
                             tile_m=tile_m)
    out_mc = out_mc[:, :ncls]                               # drop lane padding
    out = out_mc.reshape(N, H, W, ncls).transpose(0, 3, 1, 2)
    return out.astype(feats_nchw.dtype)                     # NCHW f32, like PyTorch


if __name__ == "__main__":
    key = jax.random.PRNGKey(0)
    in_features, out_features, n_classes = 16, 8, 1
    sizes = (1, 2, 3, 6)
    N, H, W = 2, 16, 16

    pkey, xkey = jax.random.split(key)
    params = init_psp_params(pkey, in_features, out_features, sizes, n_classes)
    feats = jax.random.normal(xkey, (N, in_features, H, W), jnp.float32)

    fwd = jax.jit(functools.partial(psp_module_forward, sizes=sizes))
    out = jax.block_until_ready(fwd(params, feats))
    assert out.shape == (N, n_classes, H, W), out.shape
    assert jnp.all(jnp.isfinite(out))
    print("KERNEL_OK")
</pallas_src>

<mosaic_0001>
module attributes {stable_mosaic.version = 11 : i64} {
  func.func @_psp_head_kernel(%arg0: i32, %arg1: memref<256x4xbf16, #tpu.memory_space<vmem>>, %arg2: memref<256x4xbf16, #tpu.memory_space<vmem>>, %arg3: memref<256x4xbf16, #tpu.memory_space<vmem>>, %arg4: memref<256x4xbf16, #tpu.memory_space<vmem>>, %arg5: memref<256x16xbf16, #tpu.memory_space<vmem>>, %arg6: memref<4x8xbf16, #tpu.memory_space<vmem>>, %arg7: memref<4x8xbf16, #tpu.memory_space<vmem>>, %arg8: memref<4x8xbf16, #tpu.memory_space<vmem>>, %arg9: memref<4x8xbf16, #tpu.memory_space<vmem>>, %arg10: memref<16x8xbf16, #tpu.memory_space<vmem>>, %arg11: memref<1x8xf32, #tpu.memory_space<vmem>>, %arg12: memref<8x128xbf16, #tpu.memory_space<vmem>>, %arg13: memref<1x128xf32, #tpu.memory_space<vmem>>, %arg14: memref<256x128xbf16, #tpu.memory_space<vmem>>) attributes {dimension_semantics = [#tpu.dimension_semantics<parallel>], iteration_bounds = array<i64: 2>, scalar_prefetch = 0 : i64, scratch_operands = 0 : i64, tpu.core_type = #tpu.core_type<tc>, window_params = [{transform_indices = @transform_0, window_bounds = array<i64: 256, 4>}, {transform_indices = @transform_1, window_bounds = array<i64: 256, 4>}, {transform_indices = @transform_2, window_bounds = array<i64: 256, 4>}, {transform_indices = @transform_3, window_bounds = array<i64: 256, 4>}, {transform_indices = @transform_4, window_bounds = array<i64: 256, 16>}, {pipeline_mode = #tpu.pipeline_mode<synchronous>, transform_indices = @transform_5, window_bounds = array<i64: 4, 8>}, {pipeline_mode = #tpu.pipeline_mode<synchronous>, transform_indices = @transform_6, window_bounds = array<i64: 4, 8>}, {pipeline_mode = #tpu.pipeline_mode<synchronous>, transform_indices = @transform_7, window_bounds = array<i64: 4, 8>}, {pipeline_mode = #tpu.pipeline_mode<synchronous>, transform_indices = @transform_8, window_bounds = array<i64: 4, 8>}, {pipeline_mode = #tpu.pipeline_mode<synchronous>, transform_indices = @transform_9, window_bounds = array<i64: 16, 8>}, {pipeline_mode = #tpu.pipeline_mode<synchronous>, transform_indices = @transform_10, window_bounds = array<i64: 1, 8>}, {pipeline_mode = #tpu.pipeline_mode<synchronous>, transform_indices = @transform_11, window_bounds = array<i64: 8, 128>}, {pipeline_mode = #tpu.pipeline_mode<synchronous>, transform_indices = @transform_12, window_bounds = array<i64: 1, 128>}, {transform_indices = @transform_13, window_bounds = array<i64: 256, 128>}]} {
    %c0 = arith.constant 0 : index
    %c0_0 = arith.constant 0 : index
    %0 = vector.load %arg1[%c0, %c0_0] : memref<256x4xbf16, #tpu.memory_space<vmem>>, vector<256x4xbf16>
    %c0_1 = arith.constant 0 : index
    %c0_2 = arith.constant 0 : index
    %1 = vector.load %arg6[%c0_1, %c0_2] : memref<4x8xbf16, #tpu.memory_space<vmem>>, vector<4x8xbf16>
    %cst = arith.constant dense<0.000000e+00> : vector<256x8xf32>
    %2 = tpu.matmul %0, %1, %cst {dimension_numbers = #tpu.dot_dimension_numbers<[1], [0], [0], [1], [0, 0, 1, 1], [], []>} : vector<256x4xbf16>, vector<4x8xbf16>, vector<256x8xf32> -> vector<256x8xf32>
    %c0_3 = arith.constant 0 : index
    %c0_4 = arith.constant 0 : index
    %3 = vector.load %arg2[%c0_3, %c0_4] : memref<256x4xbf16, #tpu.memory_space<vmem>>, vector<256x4xbf16>
    %c0_5 = arith.constant 0 : index
    %c0_6 = arith.constant 0 : index
    %4 = vector.load %arg7[%c0_5, %c0_6] : memref<4x8xbf16, #tpu.memory_space<vmem>>, vector<4x8xbf16>
    %cst_7 = arith.constant dense<0.000000e+00> : vector<256x8xf32>
    %5 = tpu.matmul %3, %4, %cst_7 {dimension_numbers = #tpu.dot_dimension_numbers<[1], [0], [0], [1], [0, 0, 1, 1], [], []>} : vector<256x4xbf16>, vector<4x8xbf16>, vector<256x8xf32> -> vector<256x8xf32>
    %6 = arith.addf %2, %5 : vector<256x8xf32>
    %c0_8 = arith.constant 0 : index
    %c0_9 = arith.constant 0 : index
    %7 = vector.load %arg3[%c0_8, %c0_9] : memref<256x4xbf16, #tpu.memory_space<vmem>>, vector<256x4xbf16>
    %c0_10 = arith.constant 0 : index
    %c0_11 = arith.constant 0 : index
    %8 = vector.load %arg8[%c0_10, %c0_11] : memref<4x8xbf16, #tpu.memory_space<vmem>>, vector<4x8xbf16>
    %cst_12 = arith.constant dense<0.000000e+00> : vector<256x8xf32>
    %9 = tpu.matmul %7, %8, %cst_12 {dimension_numbers = #tpu.dot_dimension_numbers<[1], [0], [0], [1], [0, 0, 1, 1], [], []>} : vector<256x4xbf16>, vector<4x8xbf16>, vector<256x8xf32> -> vector<256x8xf32>
    %10 = arith.addf %6, %9 : vector<256x8xf32>
    %c0_13 = arith.constant 0 : index
    %c0_14 = arith.constant 0 : index
    %11 = vector.load %arg4[%c0_13, %c0_14] : memref<256x4xbf16, #tpu.memory_space<vmem>>, vector<256x4xbf16>
    %c0_15 = arith.constant 0 : index
    %c0_16 = arith.constant 0 : index
    %12 = vector.load %arg9[%c0_15, %c0_16] : memref<4x8xbf16, #tpu.memory_space<vmem>>, vector<4x8xbf16>
    %cst_17 = arith.constant dense<0.000000e+00> : vector<256x8xf32>
    %13 = tpu.matmul %11, %12, %cst_17 {dimension_numbers = #tpu.dot_dimension_numbers<[1], [0], [0], [1], [0, 0, 1, 1], [], []>} : vector<256x4xbf16>, vector<4x8xbf16>, vector<256x8xf32> -> vector<256x8xf32>
    %14 = arith.addf %10, %13 : vector<256x8xf32>
    %c0_18 = arith.constant 0 : index
    %c0_19 = arith.constant 0 : index
    %15 = vector.load %arg5[%c0_18, %c0_19] : memref<256x16xbf16, #tpu.memory_space<vmem>>, vector<256x16xbf16>
    %c0_20 = arith.constant 0 : index
    %c0_21 = arith.constant 0 : index
    %16 = vector.load %arg10[%c0_20, %c0_21] : memref<16x8xbf16, #tpu.memory_space<vmem>>, vector<16x8xbf16>
    %cst_22 = arith.constant dense<0.000000e+00> : vector<256x8xf32>
    %17 = tpu.matmul %15, %16, %cst_22 {dimension_numbers = #tpu.dot_dimension_numbers<[1], [0], [0], [1], [0, 0, 1, 1], [], []>} : vector<256x16xbf16>, vector<16x8xbf16>, vector<256x8xf32> -> vector<256x8xf32>
    %18 = arith.addf %14, %17 : vector<256x8xf32>
    %c0_23 = arith.constant 0 : index
    %c0_24 = arith.constant 0 : index
    %19 = vector.load %arg11[%c0_23, %c0_24] : memref<1x8xf32, #tpu.memory_space<vmem>>, vector<1x8xf32>
    %20 = vector.broadcast %19 : vector<1x8xf32> to vector<256x8xf32>
    %21 = arith.addf %18, %20 : vector<256x8xf32>
    %cst_25 = arith.constant 0.000000e+00 : f32
    %22 = vector.broadcast %cst_25 : f32 to vector<256x8xf32>
    %23 = arith.maximumf %21, %22 : vector<256x8xf32>
    %24 = arith.truncf %23 : vector<256x8xf32> to vector<256x8xbf16>
    %c0_26 = arith.constant 0 : index
    %c0_27 = arith.constant 0 : index
    %25 = vector.load %arg12[%c0_26, %c0_27] : memref<8x128xbf16, #tpu.memory_space<vmem>>, vector<8x128xbf16>
    %cst_28 = arith.constant dense<0.000000e+00> : vector<256x128xf32>
    %26 = tpu.matmul %24, %25, %cst_28 {dimension_numbers = #tpu.dot_dimension_numbers<[1], [0], [0], [1], [0, 0, 1, 1], [], []>} : vector<256x8xbf16>, vector<8x128xbf16>, vector<256x128xf32> -> vector<256x128xf32>
    %c0_29 = arith.constant 0 : index
    %c0_30 = arith.constant 0 : index
    %27 = vector.load %arg13[%c0_29, %c0_30] : memref<1x128xf32, #tpu.memory_space<vmem>>, vector<1x128xf32>
    %28 = vector.broadcast %27 : vector<1x128xf32> to vector<256x128xf32>
    %29 = arith.addf %26, %28 : vector<256x128xf32>
    %30 = arith.truncf %29 : vector<256x128xf32> to vector<256x128xbf16>
    %c0_31 = arith.constant 0 : index
    %c0_32 = arith.constant 0 : index
    %31 = vector.load %arg14[%c0_31, %c0_32] : memref<256x128xbf16, #tpu.memory_space<vmem>>, vector<256x128xbf16>
    tpu.vector_store %arg14[%c0_31, %c0_32], %30 {strides = array<i32>} : memref<256x128xbf16, #tpu.memory_space<vmem>>, vector<256x128xbf16>,
    return
  }
  func.func @transform_0(%arg0: i32) -> (i32, i32) {
    %c0_i32 = arith.constant 0 : i32
    %c0_i32_0 = arith.constant 0 : i32
    return %arg0, %c0_i32 : i32, i32
  }
  func.func @transform_1(%arg0: i32) -> (i32, i32) {
    %c0_i32 = arith.constant 0 : i32
    %c0_i32_0 = arith.constant 0 : i32
    return %arg0, %c0_i32 : i32, i32
  }
  func.func @transform_2(%arg0: i32) -> (i32, i32) {
    %c0_i32 = arith.constant 0 : i32
    %c0_i32_0 = arith.constant 0 : i32
    return %arg0, %c0_i32 : i32, i32
  }
  func.func @transform_3(%arg0: i32) -> (i32, i32) {
    %c0_i32 = arith.constant 0 : i32
    %c0_i32_0 = arith.constant 0 : i32
    return %arg0, %c0_i32 : i32, i32
  }
  func.func @transform_4(%arg0: i32) -> (i32, i32) {
    %c0_i32 = arith.constant 0 : i32
    %c0_i32_0 = arith.constant 0 : i32
    return %arg0, %c0_i32 : i32, i32
  }
  func.func @transform_5(%arg0: i32) -> (i32, i32) {
    %c0_i32 = arith.constant 0 : i32
    %c0_i32_0 = arith.constant 0 : i32
    %c0_i32_1 = arith.constant 0 : i32
    return %c0_i32, %c0_i32_0 : i32, i32
  }
  func.func @transform_6(%arg0: i32) -> (i32, i32) {
    %c0_i32 = arith.constant 0 : i32
    %c0_i32_0 = arith.constant 0 : i32
    %c0_i32_1 = arith.constant 0 : i32
    return %c0_i32, %c0_i32_0 : i32, i32
  }
  func.func @transform_7(%arg0: i32) -> (i32, i32) {
    %c0_i32 = arith.constant 0 : i32
    %c0_i32_0 = arith.constant 0 : i32
    %c0_i32_1 = arith.constant 0 : i32
    return %c0_i32, %c0_i32_0 : i32, i32
  }
  func.func @transform_8(%arg0: i32) -> (i32, i32) {
    %c0_i32 = arith.constant 0 : i32
    %c0_i32_0 = arith.constant 0 : i32
    %c0_i32_1 = arith.constant 0 : i32
    return %c0_i32, %c0_i32_0 : i32, i32
  }
  func.func @transform_9(%arg0: i32) -> (i32, i32) {
    %c0_i32 = arith.constant 0 : i32
    %c0_i32_0 = arith.constant 0 : i32
    %c0_i32_1 = arith.constant 0 : i32
    return %c0_i32, %c0_i32_0 : i32, i32
  }
  func.func @transform_10(%arg0: i32) -> (i32, i32) {
    %c0_i32 = arith.constant 0 : i32
    %c0_i32_0 = arith.constant 0 : i32
    %c0_i32_1 = arith.constant 0 : i32
    return %c0_i32, %c0_i32_0 : i32, i32
  }
  func.func @transform_11(%arg0: i32) -> (i32, i32) {
    %c0_i32 = arith.constant 0 : i32
    %c0_i32_0 = arith.constant 0 : i32
    %c0_i32_1 = arith.constant 0 : i32
    return %c0_i32, %c0_i32_0 : i32, i32
  }
  func.func @transform_12(%arg0: i32) -> (i32, i32) {
    %c0_i32 = arith.constant 0 : i32
    %c0_i32_0 = arith.constant 0 : i32
    %c0_i32_1 = arith.constant 0 : i32
    return %c0_i32, %c0_i32_0 : i32, i32
  }
  func.func @transform_13(%arg0: i32) -> (i32, i32) {
    %c0_i32 = arith.constant 0 : i32
    %c0_i32_0 = arith.constant 0 : i32
    return %arg0, %c0_i32 : i32, i32
  }
}

</mosaic_0001>

<llo_original>
// kernel: psp_module_forward.1
$region0: #{psp_module_forward.1}
  #allocation0 [shape = 'u32[]', space=smem, size = 0x4, offset = 0x4, fixed_abs, tag = 'smem constant byte address 0x4 - core index']
  #allocation1 [shape = 'u32[144,128]{1,0:T(1,128)}', space=vmem, size = 0x12000, scoped, tag = 'internal scratch']
  %s0 = inlined_call_operand.vmem [shape: bf16[512,4], index: 0, kind: input, shape index: {}]
  %s1 = inlined_call_operand.vmem [shape: bf16[512,4], index: 1, kind: input, shape index: {}]
  %s2 = inlined_call_operand.vmem [shape: bf16[512,4], index: 2, kind: input, shape index: {}]
  %s3 = inlined_call_operand.vmem [shape: bf16[512,4], index: 3, kind: input, shape index: {}]
  %s4 = inlined_call_operand.vmem [shape: bf16[512,16], index: 4, kind: input, shape index: {}]
  %s5 = inlined_call_operand.vmem [shape: bf16[4,8], index: 5, kind: input, shape index: {}]
  %s6 = inlined_call_operand.vmem [shape: bf16[4,8], index: 6, kind: input, shape index: {}]
  %s7 = inlined_call_operand.vmem [shape: bf16[4,8], index: 7, kind: input, shape index: {}]
  %s8 = inlined_call_operand.vmem [shape: bf16[4,8], index: 8, kind: input, shape index: {}]
  %s9 = inlined_call_operand.vmem [shape: bf16[16,8], index: 9, kind: input, shape index: {}]
  %s10 = inlined_call_operand.vmem [shape: f32[1,8], index: 10, kind: input, shape index: {}]
  %s11 = inlined_call_operand.vmem [shape: bf16[8,128], index: 11, kind: input, shape index: {}]
  %s12 = inlined_call_operand.vmem [shape: f32[1,128], index: 12, kind: input, shape index: {}]
  %s13 = inlined_call_operand.vmem [shape: bf16[512,128], index: 13, kind: output, shape index: {}]
  %s14 = sld [smem:[#allocation0]]
  $region85: #{psp_module_forward.1} parent=0
    _
  %s16 = ssub.s32 1, %s14
  %s17 = scalar_select 0, %s16, %s14
  loop: start=0, step=1, limit=4
  $region2: #{psp_module_forward.1} parent=0 // loop_pre_header
    _
  $region3: #{psp_module_forward.1} parent=0 // loop_header
    %s19 = sphi 0, %s23
    %p20 = scmp.ge.s32.totalorder %s19, 4
    %s29 = sphi 0, %s31
    %s32 = sphi 0, %s29
    %s33 = sphi 0, %s32
    %s49 = sphi 0, %s33
    %s55 = sphi 0, %s57
    %s58 = sphi 0, %s55
    %s59 = sphi 0, %s58
    %s75 = sphi 0, %s59
    %s81 = sphi 0, %s83
    %s84 = sphi 0, %s81
    %s85 = sphi 0, %s84
    %s101 = sphi 0, %s85
    %s107 = sphi 0, %s109
    %s110 = sphi 0, %s107
    %s111 = sphi 0, %s110
    %s127 = sphi 0, %s111
    %s133 = sphi 0, %s135
    %s136 = sphi 0, %s133
    %s137 = sphi 0, %s136
    %s153 = sphi 0, %s137
    %s157 = sphi 0, %s157
    %s159 = sphi 0, %s157
    %s160 = sphi 0, %s159
    %s174 = sphi 0, %s160
    %s178 = sphi 0, %s178
    %s180 = sphi 0, %s178
    %s181 = sphi 0, %s180
    %s195 = sphi 0, %s181
    %s199 = sphi 0, %s199
    %s201 = sphi 0, %s199
    %s202 = sphi 0, %s201
    %s216 = sphi 0, %s202
    %s220 = sphi 0, %s220
    %s222 = sphi 0, %s220
    %s223 = sphi 0, %s222
    %s237 = sphi 0, %s223
    %s241 = sphi 0, %s241
    %s243 = sphi 0, %s241
    %s244 = sphi 0, %s243
    %s258 = sphi 0, %s244
    %s262 = sphi 0, %s262
    %s264 = sphi 0, %s262
    %s265 = sphi 0, %s264
    %s279 = sphi 0, %s265
    %s283 = sphi 0, %s283
    %s285 = sphi 0, %s283
    %s286 = sphi 0, %s285
    %s300 = sphi 0, %s286
    %s304 = sphi 0, %s304
    %s306 = sphi 0, %s304
    %s307 = sphi 0, %s306
    %s321 = sphi 0, %s307
    %s327 = sphi 0, %s329
    %s330 = sphi 0, %s327
    %s331 = sphi 0, %s330
    %s347 = sphi 0, %s331
  $region4: #{psp_module_forward.1} parent=0 // loop_header_branch
    %22 = sbr.rel (%p20) target = $region8
  $region5: #{psp_module_forward.1} parent=0 // loop_body
    %s24 = ssub.s32 %s19, 1
    %s25 = ssub.s32 %s19, 2
    %s26 = sadd.s32 %s19, 1
    %s27 = ssub.s32 %s19, %s26
    %p28 = scmp.eq.s32.totalorder %s27, 0
    %s30 = sadd.s32 %s29, 1
    %s31 = scalar_select %p28, %s29, %s30
    %p34 = pneg %p28
    %p35 = scmp.eq.s32.totalorder %s19, 1
    %p36 = por %p34, %p35
    %p37 = scmp.ne.s32.totalorder %s29, %s32
    %p38 = scmp.eq.s32.totalorder %s19, 0
    %p39 = por %p37, %p38
    %p40 = scmp.ne.s32.totalorder %s29, %s32
    %p41 = scmp.eq.s32.totalorder %s24, 1
    %p42 = por %p40, %p41
    %p43 = scmp.ne.s32.totalorder %s32, %s33
    %p44 = scmp.eq.s32.totalorder %s24, 0
    %p45 = por %p43, %p44
    %p46 = scmp.ne.s32.totalorder %s32, %s33
    %p47 = scmp.eq.s32.totalorder %s25, 1
    %p48 = por %p46, %p47
    %p50 = scmp.ne.s32.totalorder %s33, %s49
    %p51 = scmp.eq.s32.totalorder %s25, 0
    %p52 = por %p50, %p51
    %s53 = ssub.s32 %s19, %s26
    %p54 = scmp.eq.s32.totalorder %s53, 0
    %s56 = sadd.s32 %s55, 1
    %s57 = scalar_select %p54, %s55, %s56
    %p60 = pneg %p54
    %p61 = scmp.eq.s32.totalorder %s19, 1
    %p62 = por %p60, %p61
    %p63 = scmp.ne.s32.totalorder %s55, %s58
    %p64 = scmp.eq.s32.totalorder %s19, 0
    %p65 = por %p63, %p64
    %p66 = scmp.ne.s32.totalorder %s55, %s58
    %p67 = scmp.eq.s32.totalorder %s24, 1
    %p68 = por %p66, %p67
    %p69 = scmp.ne.s32.totalorder %s58, %s59
    %p70 = scmp.eq.s32.totalorder %s24, 0
    %p71 = por %p69, %p70
    %p72 = scmp.ne.s32.totalorder %s58, %s59
    %p73 = scmp.eq.s32.totalorder %s25, 1
    %p74 = por %p72, %p73
    %p76 = scmp.ne.s32.totalorder %s59, %s75
    %p77 = scmp.eq.s32.totalorder %s25, 0
    %p78 = por %p76, %p77
    %s79 = ssub.s32 %s19, %s26
    %p80 = scmp.eq.s32.totalorder %s79, 0
    %s82 = sadd.s32 %s81, 1
    %s83 = scalar_select %p80, %s81, %s82
    %p86 = pneg %p80
    %p87 = scmp.eq.s32.totalorder %s19, 1
    %p88 = por %p86, %p87
    %p89 = scmp.ne.s32.totalorder %s81, %s84
    %p90 = scmp.eq.s32.totalorder %s19, 0
    %p91 = por %p89, %p90
    %p92 = scmp.ne.s32.totalorder %s81, %s84
    %p93 = scmp.eq.s32.totalorder %s24, 1
    %p94 = por %p92, %p93
    %p95 = scmp.ne.s32.totalorder %s84, %s85
    %p96 = scmp.eq.s32.totalorder %s24, 0
    %p97 = por %p95, %p96
    %p98 = scmp.ne.s32.totalorder %s84, %s85
    %p99 = scmp.eq.s32.totalorder %s25, 1
    %p100 = por %p98, %p99
    %p102 = scmp.ne.s32.totalorder %s85, %s101
    %p103 = scmp.eq.s32.totalorder %s25, 0
    %p104 = por %p102, %p103
    %s105 = ssub.s32 %s19, %s26
    %p106 = scmp.eq.s32.totalorder %s105, 0
    %s108 = sadd.s32 %s107, 1
    %s109 = scalar_select %p106, %s107, %s108
    %p112 = pneg %p106
    %p113 = scmp.eq.s32.totalorder %s19, 1
    %p114 = por %p112, %p113
    %p115 = scmp.ne.s32.totalorder %s107, %s110
    %p116 = scmp.eq.s32.totalorder %s19, 0
    %p117 = por %p115, %p116
    %p118 = scmp.ne.s32.totalorder %s107, %s110
    %p119 = scmp.eq.s32.totalorder %s24, 1
    %p120 = por %p118, %p119
    %p121 = scmp.ne.s32.totalorder %s110, %s111
    %p122 = scmp.eq.s32.totalorder %s24, 0
    %p123 = por %p121, %p122
    %p124 = scmp.ne.s32.totalorder %s110, %s111
    %p125 = scmp.eq.s32.totalorder %s25, 1
    %p126 = por %p124, %p125
    %p128 = scmp.ne.s32.totalorder %s111, %s127
    %p129 = scmp.eq.s32.totalorder %s25, 0
    %p130 = por %p128, %p129
    %s131 = ssub.s32 %s19, %s26
    %p132 = scmp.eq.s32.totalorder %s131, 0
    %s134 = sadd.s32 %s133, 1
    %s135 = scalar_select %p132, %s133, %s134
    %p138 = pneg %p132
    %p139 = scmp.eq.s32.totalorder %s19, 1
    %p140 = por %p138, %p139
    %p141 = scmp.ne.s32.totalorder %s133, %s136
    %p142 = scmp.eq.s32.totalorder %s19, 0
    %p143 = por %p141, %p142
    %p144 = scmp.ne.s32.totalorder %s133, %s136
    %p145 = scmp.eq.s32.totalorder %s24, 1
    %p146 = por %p144, %p145
    %p147 = scmp.ne.s32.totalorder %s136, %s137
    %p148 = scmp.eq.s32.totalorder %s24, 0
    %p149 = por %p147, %p148
    %p150 = scmp.ne.s32.totalorder %s136, %s137
    %p151 = scmp.eq.s32.totalorder %s25, 1
    %p152 = por %p150, %p151
    %p154 = scmp.ne.s32.totalorder %s137, %s153
    %p155 = scmp.eq.s32.totalorder %s25, 0
    %p156 = por %p154, %p155
    %s158 = sadd.s32 %s157, 1
    %p161 = scmp.eq.s32.totalorder %s19, 1
    %p162 = scmp.ne.s32.totalorder %s157, %s159
    %p163 = scmp.eq.s32.totalorder %s19, 0
    %p164 = por %p162, %p163
    %p165 = scmp.ne.s32.totalorder %s157, %s159
    %p166 = scmp.eq.s32.totalorder %s24, 1
    %p167 = por %p165, %p166
    %p168 = scmp.ne.s32.totalorder %s159, %s160
    %p169 = scmp.eq.s32.totalorder %s24, 0
    %p170 = por %p168, %p169
    %p171 = scmp.ne.s32.totalorder %s159, %s160
    %p172 = scmp.eq.s32.totalorder %s25, 1
    %p173 = por %p171, %p172
    %p175 = scmp.ne.s32.totalorder %s160, %s174
    %p176 = scmp.eq.s32.totalorder %s25, 0
    %p177 = por %p175, %p176
    %s179 = sadd.s32 %s178, 1
    %p182 = scmp.eq.s32.totalorder %s19, 1
    %p183 = scmp.ne.s32.totalorder %s178, %s180
    %p184 = scmp.eq.s32.totalorder %s19, 0
    %p185 = por %p183, %p184
    %p186 = scmp.ne.s32.totalorder %s178, %s180
    %p187 = scmp.eq.s32.totalorder %s24, 1
    %p188 = por %p186, %p187
    %p189 = scmp.ne.s32.totalorder %s180, %s181
    %p190 = scmp.eq.s32.totalorder %s24, 0
    %p191 = por %p189, %p190
    %p192 = scmp.ne.s32.totalorder %s180, %s181
    %p193 = scmp.eq.s32.totalorder %s25, 1
    %p194 = por %p192, %p193
    %p196 = scmp.ne.s32.totalorder %s181, %s195
    %p197 = scmp.eq.s32.totalorder %s25, 0
    %p198 = por %p196, %p197
    %s200 = sadd.s32 %s199, 1
    %p203 = scmp.eq.s32.totalorder %s19, 1
    %p204 = scmp.ne.s32.totalorder %s199, %s201
    %p205 = scmp.eq.s32.totalorder %s19, 0
    %p206 = por %p204, %p205
    %p207 = scmp.ne.s32.totalorder %s199, %s201
    %p208 = scmp.eq.s32.totalorder %s24, 1
    %p209 = por %p207, %p208
    %p210 = scmp.ne.s32.totalorder %s201, %s202
    %p211 = scmp.eq.s32.totalorder %s24, 0
    %p212 = por %p210, %p211
    %p213 = scmp.ne.s32.totalorder %s201, %s202
    %p214 = scmp.eq.s32.totalorder %s25, 1
    %p215 = por %p213, %p214
    %p217 = scmp.ne.s32.totalorder %s202, %s216
    %p218 = scmp.eq.s32.totalorder %s25, 0
    %p219 = por %p217, %p218
    %s221 = sadd.s32 %s220, 1
    %p224 = scmp.eq.s32.totalorder %s19, 1
    %p225 = scmp.ne.s32.totalorder %s220, %s222
    %p226 = scmp.eq.s32.totalorder %s19, 0
    %p227 = por %p225, %p226
    %p228 = scmp.ne.s32.totalorder %s220, %s222
    %p229 = scmp.eq.s32.totalorder %s24, 1
    %p230 = por %p228, %p229
    %p231 = scmp.ne.s32.totalorder %s222, %s223
    %p232 = scmp.eq.s32.totalorder %s24, 0
    %p233 = por %p231, %p232
    %p234 = scmp.ne.s32.totalorder %s222, %s223
    %p235 = scmp.eq.s32.totalorder %s25, 1
    %p236 = por %p234, %p235
    %p238 = scmp.ne.s32.totalorder %s223, %s237
    %p239 = scmp.eq.s32.totalorder %s25, 0
    %p240 = por %p238, %p239
    %s242 = sadd.s32 %s241, 1
    %p245 = scmp.eq.s32.totalorder %s19, 1
    %p246 = scmp.ne.s32.totalorder %s241, %s243
    %p247 = scmp.eq.s32.totalorder %s19, 0
    %p248 = por %p246, %p247
    %p249 = scmp.ne.s32.totalorder %s241, %s243
    %p250 = scmp.eq.s32.totalorder %s24, 1
    %p251 = por %p249, %p250
    %p252 = scmp.ne.s32.totalorder %s243, %s244
    %p253 = scmp.eq.s32.totalorder %s24, 0
    %p254 = por %p252, %p253
    %p255 = scmp.ne.s32.totalorder %s243, %s244
    %p256 = scmp.eq.s32.totalorder %s25, 1
    %p257 = por %p255, %p256
    %p259 = scmp.ne.s32.totalorder %s244, %s258
    %p260 = scmp.eq.s32.totalorder %s25, 0
    %p261 = por %p259, %p260
    %s263 = sadd.s32 %s262, 1
    %p266 = scmp.eq.s32.totalorder %s19, 1
    %p267 = scmp.ne.s32.totalorder %s262, %s264
    %p268 = scmp.eq.s32.totalorder %s19, 0
    %p269 = por %p267, %p268
    %p270 = scmp.ne.s32.totalorder %s262, %s264
    %p271 = scmp.eq.s32.totalorder %s24, 1
    %p272 = por %p270, %p271
    %p273 = scmp.ne.s32.totalorder %s264, %s265
    %p274 = scmp.eq.s32.totalorder %s24, 0
    %p275 = por %p273, %p274
    %p276 = scmp.ne.s32.totalorder %s264, %s265
    %p277 = scmp.eq.s32.totalorder %s25, 1
    %p278 = por %p276, %p277
    %p280 = scmp.ne.s32.totalorder %s265, %s279
    %p281 = scmp.eq.s32.totalorder %s25, 0
    %p282 = por %p280, %p281
    %s284 = sadd.s32 %s283, 1
    %p287 = scmp.eq.s32.totalorder %s19, 1
    %p288 = scmp.ne.s32.totalorder %s283, %s285
    %p289 = scmp.eq.s32.totalorder %s19, 0
    %p290 = por %p288, %p289
    %p291 = scmp.ne.s32.totalorder %s283, %s285
    %p292 = scmp.eq.s32.totalorder %s24, 1
    %p293 = por %p291, %p292
    %p294 = scmp.ne.s32.totalorder %s285, %s286
    %p295 = scmp.eq.s32.totalorder %s24, 0
    %p296 = por %p294, %p295
    %p297 = scmp.ne.s32.totalorder %s285, %s286
    %p298 = scmp.eq.s32.totalorder %s25, 1
    %p299 = por %p297, %p298
    %p301 = scmp.ne.s32.totalorder %s286, %s300
    %p302 = scmp.eq.s32.totalorder %s25, 0
    %p303 = por %p301, %p302
    %s305 = sadd.s32 %s304, 1
    %p308 = scmp.eq.s32.totalorder %s19, 1
    %p309 = scmp.ne.s32.totalorder %s304, %s306
    %p310 = scmp.eq.s32.totalorder %s19, 0
    %p311 = por %p309, %p310
    %p312 = scmp.ne.s32.totalorder %s304, %s306
    %p313 = scmp.eq.s32.totalorder %s24, 1
    %p314 = por %p312, %p313
    %p315 = scmp.ne.s32.totalorder %s306, %s307
    %p316 = scmp.eq.s32.totalorder %s24, 0
    %p317 = por %p315, %p316
    %p318 = scmp.ne.s32.totalorder %s306, %s307
    %p319 = scmp.eq.s32.totalorder %s25, 1
    %p320 = por %p318, %p319
    %p322 = scmp.ne.s32.totalorder %s307, %s321
    %p323 = scmp.eq.s32.totalorder %s25, 0
    %p324 = por %p322, %p323
    %s325 = ssub.s32 %s19, %s26
    %p326 = scmp.eq.s32.totalorder %s325, 0
    %s328 = sadd.s32 %s327, 1
    %s329 = scalar_select %p326, %s327, %s328
    %p332 = pneg %p326
    %p333 = scmp.eq.s32.totalorder %s19, 1
    %p334 = por %p332, %p333
    %p335 = scmp.ne.s32.totalorder %s327, %s330
    %p336 = scmp.eq.s32.totalorder %s19, 0
    %p337 = por %p335, %p336
    %p338 = scmp.ne.s32.totalorder %s327, %s330
    %p339 = scmp.eq.s32.totalorder %s24, 1
    %p340 = por %p338, %p339
    %p341 = scmp.ne.s32.totalorder %s330, %s331
    %p342 = scmp.eq.s32.totalorder %s24, 0
    %p343 = por %p341, %p342
    %p344 = scmp.ne.s32.totalorder %s330, %s331
    %p345 = scmp.eq.s32.totalorder %s25, 1
    %p346 = por %p344, %p345
    %p348 = scmp.ne.s32.totalorder %s331, %s347
    %p349 = scmp.eq.s32.totalorder %s25, 0
    %p350 = por %p348, %p349
    %p351 = scmp.le.s32.totalorder 1, %s19
    %p352 = scmp.lt.s32.totalorder %s19, 3
    %p353 = pnand %p351, %p352
    %p354 = pneg %p353
    // Predicated region
    $region9: #{psp_module_forward.1} parent=5 // pred_check
      _
    $region10: #{psp_module_forward.1} parent=5 // pred_check_branch
      %356 = sbr.rel (%p353) target = $region12
    $region11: #{psp_module_forward.1} parent=5 // pred_region
      %s357 = ssub.s32 %s19, 1
      // Predicated region
      $region13: #{psp_module_forward.1} parent=11 // pred_check
        %p358 = pneg %p170
      $region14: #{psp_module_forward.1} parent=11 // pred_check_branch
        %360 = sbr.rel (%p358) target = $region16
      $region15: #{psp_module_forward.1} parent=11 // pred_region
        _
      $region16: #{psp_module_forward.1} parent=11 // pred_fallthru
        _
      // Predicated region
      $region17: #{psp_module_forward.1} parent=11 // pred_check
        %p361 = pneg %p191
      $region18: #{psp_module_forward.1} parent=11 // pred_check_branch
        %363 = sbr.rel (%p361) target = $region20
      $region19: #{psp_module_forward.1} parent=11 // pred_region
        _
      $region20: #{psp_module_forward.1} parent=11 // pred_fallthru
        _
      // Predicated region
      $region21: #{psp_module_forward.1} parent=11 // pred_check
        %p364 = pneg %p212
      $region22: #{psp_module_forward.1} parent=11 // pred_check_branch
        %366 = sbr.rel (%p364) target = $region24
      $region23: #{psp_module_forward.1} parent=11 // pred_region
        _
      $region24: #{psp_module_forward.1} parent=11 // pred_fallthru
        _
      // Predicated region
      $region25: #{psp_module_forward.1} parent=11 // pred_check
        %p367 = pneg %p233
      $region26: #{psp_module_forward.1} parent=11 // pred_check_branch
        %369 = sbr.rel (%p367) target = $region28
      $region27: #{psp_module_forward.1} parent=11 // pred_region
        _
      $region28: #{psp_module_forward.1} parent=11 // pred_fallthru
        _
      // Predicated region
      $region29: #{psp_module_forward.1} parent=11 // pred_check
        %p370 = pneg %p254
      $region30: #{psp_module_forward.1} parent=11 // pred_check_branch
        %372 = sbr.rel (%p370) target = $region32
      $region31: #{psp_module_forward.1} parent=11 // pred_region
        _
      $region32: #{psp_module_forward.1} parent=11 // pred_fallthru
        _
      // Predicated region
      $region33: #{psp_module_forward.1} parent=11 // pred_check
        %p373 = pneg %p275
      $region34: #{psp_module_forward.1} parent=11 // pred_check_branch
        %375 = sbr.rel (%p373) target = $region36
      $region35: #{psp_module_forward.1} parent=11 // pred_region
        _
      $region36: #{psp_module_forward.1} parent=11 // pred_fallthru
        _
      // Predicated region
      $region37: #{psp_module_forward.1} parent=11 // pred_check
        %p376 = pneg %p296
      $region38: #{psp_module_forward.1} parent=11 // pred_check_branch
        %378 = sbr.rel (%p376) target = $region40
      $region39: #{psp_module_forward.1} parent=11 // pred_region
        _
      $region40: #{psp_module_forward.1} parent=11 // pred_fallthru
        _
      // Predicated region
      $region41: #{psp_module_forward.1} parent=11 // pred_check
        %p379 = pneg %p317
      $region42: #{psp_module_forward.1} parent=11 // pred_check_branch
        %381 = sbr.rel (%p379) target = $region44
      $region43: #{psp_module_forward.1} parent=11 // pred_region
        _
      $region44: #{psp_module_forward.1} parent=11 // pred_fallthru
        _
    $region12: #{psp_module_forward.1} parent=5 // pred_fallthru
      _
    %p382 = scmp.lt.s32.totalorder %s19, 2
    // Predicated region
    $region45: #{psp_module_forward.1} parent=5 // pred_check
      %p383 = pneg %p382
    $region46: #{psp_module_forward.1} parent=5 // pred_check_branch
      %385 = sbr.rel (%p383) target = $region48
    $region47: #{psp_module_forward.1} parent=5 // pred_region
      // Predicated region
      $region49: #{psp_module_forward.1} parent=47 // pred_check
        %p386 = pneg %p39
      $region50: #{psp_module_forward.1} parent=47 // pred_check_branch
        %388 = sbr.rel (%p386) target = $region52
      $region51: #{psp_module_forward.1} parent=47 // pred_region
        %s389 = smul.u32 32, %s19
        %p390 = scmp.lt.s32.totalorder %s389, 63
        %s391 = scalar_select %p390, %s389, 63
        %s392 = smul.addr %s391, 4
        %s393 = scalar_lea.vmem %s0, %s392
        %s394 = smul.u32 32, %s19
      $region52: #{psp_module_forward.1} parent=47 // pred_fallthru
        _
      // Predicated region
      $region53: #{psp_module_forward.1} parent=47 // pred_check
        %p395 = pneg %p65
      $region54: #{psp_module_forward.1} parent=47 // pred_check_branch
        %397 = sbr.rel (%p395) target = $region56
      $region55: #{psp_module_forward.1} parent=47 // pred_region
        %s398 = smul.u32 32, %s19
        %p399 = scmp.lt.s32.totalorder %s398, 63
        %s400 = scalar_select %p399, %s398, 63
        %s401 = smul.addr %s400, 4
        %s402 = scalar_lea.vmem %s1, %s401
        %s403 = smul.u32 32, %s19
      $region56: #{psp_module_forward.1} parent=47 // pred_fallthru
        _
      // Predicated region
      $region57: #{psp_module_forward.1} parent=47 // pred_check
        %p404 = pneg %p91
      $region58: #{psp_module_forward.1} parent=47 // pred_check_branch
        %406 = sbr.rel (%p404) target = $region60
      $region59: #{psp_module_forward.1} parent=47 // pred_region
        %s407 = smul.u32 32, %s19
        %p408 = scmp.lt.s32.totalorder %s407, 63
        %s409 = scalar_select %p408, %s407, 63
        %s410 = smul.addr %s409, 4
        %s411 = scalar_lea.vmem %s2, %s410
        %s412 = smul.u32 32, %s19
      $region60: #{psp_module_forward.1} parent=47 // pred_fallthru
        _
      // Predicated region
      $region61: #{psp_module_forward.1} parent=47 // pred_check
        %p413 = pneg %p117
      $region62: #{psp_module_forward.1} parent=47 // pred_check_branch
        %415 = sbr.rel (%p413) target = $region64
      $region63: #{psp_module_forward.1} parent=47 // pred_region
        %s416 = smul.u32 32, %s19
        %p417 = scmp.lt.s32.totalorder %s416, 63
        %s418 = scalar_select %p417, %s416, 63
        %s419 = smul.addr %s418, 4
        %s420 = scalar_lea.vmem %s3, %s419
        %s421 = smul.u32 32, %s19
      $region64: #{psp_module_forward.1} parent=47 // pred_fallthru
        _
      // Predicated region
      $region65: #{psp_module_forward.1} parent=47 // pred_check
        %p422 = pneg %p143
      $region66: #{psp_module_forward.1} parent=47 // pred_check_branch
        %424 = sbr.rel (%p422) target = $region68
      $region67: #{psp_module_forward.1} parent=47 // pred_region
        %s425 = smul.u32 32, %s19
        %p426 = scmp.lt.s32.totalorder %s425, 63
        %s427 = scalar_select %p426, %s425, 63
        %s428 = smul.addr %s427, 4
        %s429 = scalar_lea.vmem %s4, %s428
        %s430 = smul.u32 32, %s19
      $region68: #{psp_module_forward.1} parent=47 // pred_fallthru
        _
    $region48: #{psp_module_forward.1} parent=5 // pred_fallthru
      _
    %p431 = scmp.le.s32.totalorder 1, %s19
    %p432 = scmp.lt.s32.totalorder %s19, 3
    %p433 = pnand %p431, %p432
    %p434 = pneg %p433
    // Predicated region
    $region69: #{psp_module_forward.1} parent=5 // pred_check
      _
    $region70: #{psp_module_forward.1} parent=5 // pred_check_branch
      %436 = sbr.rel (%p433) target = $region72
    $region71: #{psp_module_forward.1} parent=5 // pred_region
      %s437 = ssub.s32 %s19, 1
      %s438 = smul.u32 32, %s24
      %p439 = scmp.lt.s32.totalorder %s438, 63
      %s440 = scalar_select %p439, %s438, 63
      %s441 = smul.addr %s440, 4
      %s442 = scalar_lea.vmem %s0, %s441
      %p443 = pneg %p45
      %p444 = pneg %p42
      %s445 = smul.u32 32, %s24
      %p446 = scmp.lt.s32.totalorder %s445, 63
      %s447 = scalar_select %p446, %s445, 63
      %s448 = smul.addr %s447, 4
      %s449 = scalar_lea.vmem %s1, %s448
      %p450 = pneg %p71
      %p451 = pneg %p68
      %s452 = smul.u32 32, %s24
      %p453 = scmp.lt.s32.totalorder %s452, 63
      %s454 = scalar_select %p453, %s452, 63
      %s455 = smul.addr %s454, 4
      %s456 = scalar_lea.vmem %s2, %s455
      %p457 = pneg %p97
      %p458 = pneg %p94
      %s459 = smul.u32 32, %s24
      %p460 = scmp.lt.s32.totalorder %s459, 63
      %s461 = scalar_select %p460, %s459, 63
      %s462 = smul.addr %s461, 4
      %s463 = scalar_lea.vmem %s3, %s462
      %p464 = pneg %p123
      %p465 = pneg %p120
      %s466 = smul.u32 32, %s24
      %p467 = scmp.lt.s32.totalorder %s466, 63
      %s468 = scalar_select %p467, %s466, 63
      %s469 = smul.addr %s468, 4
      %s470 = scalar_lea.vmem %s4, %s469
      %p471 = pneg %p149
      %p472 = pneg %p146
      %p473 = pneg %p170
      %p474 = pneg %p167
      %p475 = pneg %p191
      %p476 = pneg %p188
      %p477 = pneg %p212
      %p478 = pneg %p209
      %p479 = pneg %p233
      %p480 = pneg %p230
      %p481 = pneg %p254
      %p482 = pneg %p251
      %p483 = pneg %p275
      %p484 = pneg %p272
      %p485 = pneg %p296
      %p486 = pneg %p293
      %p487 = pneg %p317
      %p488 = pneg %p314
      %p489 = pneg %p343
      %p490 = pneg %p340
      %s491 = smul.u32 32, %s24
      %p492 = scmp.lt.s32.totalorder %s491, 63
      %s493 = scalar_select %p492, %s491, 63
      %s494 = smul.addr %s493, 4
      %s495 = scalar_lea.vmem %s13, %s494
      %s496 = smul.u32 32, %s24
      %p497 = scmp.lt.s32.totalorder %s496, 63
      %s498 = scalar_select %p497, %s496, 63
      %s499 = smul.addr %s498, 4
      %s500 = scalar_lea.vmem %s0, %s499
      %s501 = smul.u32 32, %s24
      %s502 = smul.u32 32, %s24
      %p503 = scmp.lt.s32.totalorder %s502, 63
      %s504 = scalar_select %p503, %s502, 63
      %s505 = smul.addr %s504, 4
      %s506 = scalar_lea.vmem %s1, %s505
      %s507 = smul.u32 32, %s24
      %s508 = smul.u32 32, %s24
      %p509 = scmp.lt.s32.totalorder %s508, 63
      %s510 = scalar_select %p509, %s508, 63
      %s511 = smul.addr %s510, 4
      %s512 = scalar_lea.vmem %s2, %s511
      %s513 = smul.u32 32, %s24
      %s514 = smul.u32 32, %s24
      %p515 = scmp.lt.s32.totalorder %s514, 63
      %s516 = scalar_select %p515, %s514, 63
      %s517 = smul.addr %s516, 4
      %s518 = scalar_lea.vmem %s3, %s517
      %s519 = smul.u32 32, %s24
      %s520 = smul.u32 32, %s24
      %p521 = scmp.lt.s32.totalorder %s520, 63
      %s522 = scalar_select %p521, %s520, 63
      %s523 = smul.addr %s522, 4
      %s524 = scalar_lea.vmem %s4, %s523
      %s525 = smul.u32 32, %s24
      %s526 = smul.u32 32, %s24
      %p527 = scmp.lt.s32.totalorder %s526, 63
      %s528 = scalar_select %p527, %s526, 63
      %s529 = smul.addr %s528, 4
      %s530 = scalar_lea.vmem %s13, %s529
      %s531 = smul.u32 32, %s24
      %v533 = vld [vmem:[%s500] sm:$0xf]
      %v534 = vld [vmem:[%s500 + $0x4] sm:$0xf]
      %v535 = vld [vmem:[%s500 + $0x8] sm:$0xf]
      %v536 = vld [vmem:[%s500 + $0xc] sm:$0xf]
      %v537 = vld [vmem:[%s500 + $0x10] sm:$0xf]
      %v538 = vld [vmem:[%s500 + $0x14] sm:$0xf]
      %v539 = vld [vmem:[%s500 + $0x18] sm:$0xf]
      %v540 = vld [vmem:[%s500 + $0x1c] sm:$0xf]
      %v541 = vld [vmem:[%s500 + $0x20] sm:$0xf]
      %v542 = vld [vmem:[%s500 + $0x24] sm:$0xf]
      %v543 = vld [vmem:[%s500 + $0x28] sm:$0xf]
      %v544 = vld [vmem:[%s500 + $0x2c] sm:$0xf]
      %v545 = vld [vmem:[%s500 + $0x30] sm:$0xf]
      %v546 = vld [vmem:[%s500 + $0x34] sm:$0xf]
      %v547 = vld [vmem:[%s500 + $0x38] sm:$0xf]
      %v548 = vld [vmem:[%s500 + $0x3c] sm:$0xf]
      %v549 = vld [vmem:[%s500 + $0x40] sm:$0xf]
      %v550 = vld [vmem:[%s500 + $0x44] sm:$0xf]
      %v551 = vld [vmem:[%s500 + $0x48] sm:$0xf]
      %v552 = vld [vmem:[%s500 + $0x4c] sm:$0xf]
      %v553 = vld [vmem:[%s500 + $0x50] sm:$0xf]
      %v554 = vld [vmem:[%s500 + $0x54] sm:$0xf]
      %v555 = vld [vmem:[%s500 + $0x58] sm:$0xf]
      %v556 = vld [vmem:[%s500 + $0x5c] sm:$0xf]
      %v557 = vld [vmem:[%s500 + $0x60] sm:$0xf]
      %v558 = vld [vmem:[%s500 + $0x64] sm:$0xf]
      %v559 = vld [vmem:[%s500 + $0x68] sm:$0xf]
      %v560 = vld [vmem:[%s500 + $0x6c] sm:$0xf]
      %v561 = vld [vmem:[%s500 + $0x70] sm:$0xf]
      %v562 = vld [vmem:[%s500 + $0x74] sm:$0xf]
      %v563 = vld [vmem:[%s500 + $0x78] sm:$0xf]
      %v564 = vld [vmem:[%s500 + $0x7c] sm:$0xf]
      %v565 = vld [vmem:[%s5] sm:$0x3]
      %v566 = vld [vmem:[%s506] sm:$0xf]
      %v567 = vld [vmem:[%s506 + $0x4] sm:$0xf]
      %v568 = vld [vmem:[%s506 + $0x8] sm:$0xf]
      %v569 = vld [vmem:[%s506 + $0xc] sm:$0xf]
      %v570 = vld [vmem:[%s506 + $0x10] sm:$0xf]
      %v571 = vld [vmem:[%s506 + $0x14] sm:$0xf]
      %v572 = vld [vmem:[%s506 + $0x18] sm:$0xf]
      %v573 = vld [vmem:[%s506 + $0x1c] sm:$0xf]
      %v574 = vld [vmem:[%s506 + $0x20] sm:$0xf]
      %v575 = vld [vmem:[%s506 + $0x24] sm:$0xf]
      %v576 = vld [vmem:[%s506 + $0x28] sm:$0xf]
      %v577 = vld [vmem:[%s506 + $0x2c] sm:$0xf]
      %v578 = vld [vmem:[%s506 + $0x30] sm:$0xf]
      %v579 = vld [vmem:[%s506 + $0x34] sm:$0xf]
      %v580 = vld [vmem:[%s506 + $0x38] sm:$0xf]
      %v581 = vld [vmem:[%s506 + $0x3c] sm:$0xf]
      %v582 = vld [vmem:[%s506 + $0x40] sm:$0xf]
      %v583 = vld [vmem:[%s506 + $0x44] sm:$0xf]
      %v584 = vld [vmem:[%s506 + $0x48] sm:$0xf]
      %v585 = vld [vmem:[%s506 + $0x4c] sm:$0xf]
      %v586 = vld [vmem:[%s506 + $0x50] sm:$0xf]
      %v587 = vld [vmem:[%s506 + $0x54] sm:$0xf]
      %v588 = vld [vmem:[%s506 + $0x58] sm:$0xf]
      %v589 = vld [vmem:[%s506 + $0x5c] sm:$0xf]
      %v590 = vld [vmem:[%s506 + $0x60] sm:$0xf]
      %v591 = vld [vmem:[%s506 + $0x64] sm:$0xf]
      %v592 = vld [vmem:[%s506 + $0x68] sm:$0xf]
      %v593 = vld [vmem:[%s506 + $0x6c] sm:$0xf]
      %v594 = vld [vmem:[%s506 + $0x70] sm:$0xf]
      %v595 = vld [vmem:[%s506 + $0x74] sm:$0xf]
      %v596 = vld [vmem:[%s506 + $0x78] sm:$0xf]
      %v597 = vld [vmem:[%s506 + $0x7c] sm:$0xf]
      %v598 = vld [vmem:[%s6] sm:$0x3]
      %v631 = vunpack.c.l.b16 %v566
      %v632 = vunpack.c.l.b16 %v567
      %v633 = vunpack.c.l.b16 %v568
      %v634 = vunpack.c.l.b16 %v569
      %v635 = vunpack.c.l.b16 %v570
      %v636 = vunpack.c.l.b16 %v571
      %v637 = vunpack.c.l.b16 %v572
      %v638 = vunpack.c.l.b16 %v573
      %v639 = vunpack.c.l.b16 %v574
      %v640 = vunpack.c.l.b16 %v575
      %v641 = vunpack.c.l.b16 %v576
      %v642 = vunpack.c.l.b16 %v577
      %v643 = vunpack.c.l.b16 %v578
      %v644 = vunpack.c.l.b16 %v579
      %v645 = vunpack.c.l.b16 %v580
      %v646 = vunpack.c.l.b16 %v581
      %v647 = vunpack.c.l.b16 %v582
      %v648 = vunpack.c.l.b16 %v583
      %v649 = vunpack.c.l.b16 %v584
      %v650 = vunpack.c.l.b16 %v585
      %v651 = vunpack.c.l.b16 %v586
      %v652 = vunpack.c.l.b16 %v587
      %v653 = vunpack.c.l.b16 %v588
      %v654 = vunpack.c.l.b16 %v589
      %v655 = vunpack.c.l.b16 %v590
      %v656 = vunpack.c.l.b16 %v591
      %v657 = vunpack.c.l.b16 %v592
      %v658 = vunpack.c.l.b16 %v593
      %v659 = vunpack.c.l.b16 %v594
      %v660 = vunpack.c.l.b16 %v595
      %v661 = vunpack.c.l.b16 %v596
      %v662 = vunpack.c.l.b16 %v597
      %v663 = vpack.c.b16 %v632, %v631
      %v664 = vpack.c.b16 %v634, %v633
      %v665 = vpack.c.b16 %v636, %v635
      %v666 = vpack.c.b16 %v638, %v637
      %v667 = vpack.c.b16 %v640, %v639
      %v668 = vpack.c.b16 %v642, %v641
      %v669 = vpack.c.b16 %v644, %v643
      %v670 = vpack.c.b16 %v646, %v645
      %v671 = vpack.c.b16 %v648, %v647
      %v672 = vpack.c.b16 %v650, %v649
      %v673 = vpack.c.b16 %v652, %v651
      %v674 = vpack.c.b16 %v654, %v653
      %v675 = vpack.c.b16 %v656, %v655
      %v676 = vpack.c.b16 %v658, %v657
      %v677 = vpack.c.b16 %v660, %v659
      %v678 = vpack.c.b16 %v662, %v661
      %vm679 = vcmask 31744
      %v681 = vsel %vm679, %v663, 0
      %v684 = vsel %vm679, %v664, 0
      %v687 = vsel %vm679, %v665, 0
      %v690 = vsel %vm679, %v666, 0
      %v693 = vsel %vm679, %v667, 0
      %v696 = vsel %vm679, %v668, 0
      %v699 = vsel %vm679, %v669, 0
      %v702 = vsel %vm679, %v670, 0
      %v705 = vsel %vm679, %v671, 0
      %v708 = vsel %vm679, %v672, 0
      %v711 = vsel %vm679, %v673, 0
      %v714 = vsel %vm679, %v674, 0
      %v717 = vsel %vm679, %v675, 0
      %v720 = vsel %vm679, %v676, 0
      %v723 = vsel %vm679, %v677, 0
      %v726 = vsel %vm679, %v678, 0
      %vm728 = vcmask 1041408
      %v730 = vsel %vm728, %v598, 0
      %732 = vmatprep.subr.bf16.mxu0 0
      %733 = vmatpush1.bf16.msra.mxu0 0
      %734 = vmatprep.subr.bf16.mxu0 0
      %735 = vmatpush1.bf16.msra.mxu0 0
      %736 = vmatprep.subr.bf16.mxu0 0
      %737 = vmatpush1.bf16.msra.mxu0 0
      %738 = vmatprep.subr.bf16.mxu0 0
      %739 = vmatpush1.bf16.msra.mxu0 0
      %740 = vmatprep.subr.bf16.mxu0 0
      %741 = vmatpush1.bf16.msra.mxu0 0
      %742 = vmatprep.subr.bf16.mxu0 0
      %743 = vmatpush1.bf16.msra.mxu0 0
      %744 = vmatprep.subr.bf16.mxu0 0
      %745 = vmatpush1.bf16.msra.mxu0 0
      %746 = vmatprep.subr.bf16.mxu0 0
      %747 = vmatpush1.bf16.msra.mxu0 %v730
      %748 = vmatprep.subr.bf16.mxu0 0
      %749 = vmatpush2.bf16.msra.mxu0 0
      %750 = vmatprep.subr.bf16.mxu0 0
      %751 = vmatpush2.bf16.msra.mxu0 0
      %752 = vmatprep.subr.bf16.mxu0 0
      %753 = vmatpush2.bf16.msra.mxu0 0
      %754 = vmatprep.subr.bf16.mxu0 0
      %755 = vmatpush2.bf16.msra.mxu0 0
      %756 = vmatprep.subr.bf16.mxu0 0
      %757 = vmatpush2.bf16.msra.mxu0 0
      %758 = vmatprep.subr.bf16.mxu0 0
      %759 = vmatpush2.bf16.msra.mxu0 0
      %760 = vmatprep.subr.bf16.mxu0 0
      %761 = vmatpush2.bf16.msra.mxu0 0
      %762 = vmatprep.subr.bf16.mxu0 0
      %763 = vmatpush2.bf16.msra.mxu0 0
      %764 = vmatprep.mubr.bf16.mxu0 0
      %765 = vmatmul.mubr.bf16.gmra.mxu0 %v681
      %v766 = vpop.f32.mrf.mxu0
      %v767 = vadd.f32 0.0, %v766
      %v768 = vpop.f32.mrf.mxu0
      %v769 = vpop.f32.mrf.mxu0
      %v770 = vadd.f32 0.0, %v769
      %v771 = vpop.f32.mrf.mxu0
      %772 = vmatprep.mubr.bf16.mxu0 0
      %773 = vmatmul.mubr.bf16.gmra.mxu0 %v684
      %v774 = vpop.f32.mrf.mxu0
      %v775 = vadd.f32 0.0, %v774
      %v776 = vpop.f32.mrf.mxu0
      %v777 = vpop.f32.mrf.mxu0
      %v778 = vadd.f32 0.0, %v777
      %v779 = vpop.f32.mrf.mxu0
      %780 = vmatprep.mubr.bf16.mxu0 0
      %781 = vmatmul.mubr.bf16.gmra.mxu0 %v687
      %v782 = vpop.f32.mrf.mxu0
      %v783 = vadd.f32 0.0, %v782
      %v784 = vpop.f32.mrf.mxu0
      %v785 = vpop.f32.mrf.mxu0
      %v786 = vadd.f32 0.0, %v785
      %v787 = vpop.f32.mrf.mxu0
      %788 = vmatprep.mubr.bf16.mxu0 0
      %789 = vmatmul.mubr.bf16.gmra.mxu0 %v690
      %v790 = vpop.f32.mrf.mxu0
      %v791 = vadd.f32 0.0, %v790
      %v792 = vpop.f32.mrf.mxu0
      %v793 = vpop.f32.mrf.mxu0
      %v794 = vadd.f32 0.0, %v793
      %v795 = vpop.f32.mrf.mxu0
      %796 = vmatprep.mubr.bf16.mxu0 0
      %797 = vmatmul.mubr.bf16.gmra.mxu0 %v693
      %v798 = vpop.f32.mrf.mxu0
      %v799 = vadd.f32 0.0, %v798
      %v800 = vpop.f32.mrf.mxu0
      %v801 = vpop.f32.mrf.mxu0
      %v802 = vadd.f32 0.0, %v801
      %v803 = vpop.f32.mrf.mxu0
      %804 = vmatprep.mubr.bf16.mxu0 0
      %805 = vmatmul.mubr.bf16.gmra.mxu0 %v696
      %v806 = vpop.f32.mrf.mxu0
      %v807 = vadd.f32 0.0, %v806
      %v808 = vpop.f32.mrf.mxu0
      %v809 = vpop.f32.mrf.mxu0
      %v810 = vadd.f32 0.0, %v809
      %v811 = vpop.f32.mrf.mxu0
      %812 = vmatprep.mubr.bf16.mxu0 0
      %813 = vmatmul.mubr.bf16.gmra.mxu0 %v699
      %v814 = vpop.f32.mrf.mxu0
      %v815 = vadd.f32 0.0, %v814
      %v816 = vpop.f32.mrf.mxu0
      %v817 = vpop.f32.mrf.mxu0
      %v818 = vadd.f32 0.0, %v817
      %v819 = vpop.f32.mrf.mxu0
      %820 = vmatprep.mubr.bf16.mxu0 0
      %821 = vmatmul.mubr.bf16.gmra.mxu0 %v702
      %v822 = vpop.f32.mrf.mxu0
      %v823 = vadd.f32 0.0, %v822
      %v824 = vpop.f32.mrf.mxu0
      %v825 = vpop.f32.mrf.mxu0
      %v826 = vadd.f32 0.0, %v825
      %v827 = vpop.f32.mrf.mxu0
      %828 = vmatprep.mubr.bf16.mxu0 0
      %829 = vmatmul.mubr.bf16.gmra.mxu0 %v705
      %v830 = vpop.f32.mrf.mxu0
      %v831 = vadd.f32 0.0, %v830
      %v832 = vpop.f32.mrf.mxu0
      %v833 = vpop.f32.mrf.mxu0
      %v834 = vadd.f32 0.0, %v833
      %v835 = vpop.f32.mrf.mxu0
      %836 = vmatprep.mubr.bf16.mxu0 0
      %837 = vmatmul.mubr.bf16.gmra.mxu0 %v708
      %v838 = vpop.f32.mrf.mxu0
      %v839 = vadd.f32 0.0, %v838
      %v840 = vpop.f32.mrf.mxu0
      %v841 = vpop.f32.mrf.mxu0
      %v842 = vadd.f32 0.0, %v841
      %v843 = vpop.f32.mrf.mxu0
      %844 = vmatprep.mubr.bf16.mxu0 0
      %845 = vmatmul.mubr.bf16.gmra.mxu0 %v711
      %v846 = vpop.f32.mrf.mxu0
      %v847 = vadd.f32 0.0, %v846
      %v848 = vpop.f32.mrf.mxu0
      %v849 = vpop.f32.mrf.mxu0
      %v850 = vadd.f32 0.0, %v849
      %v851 = vpop.f32.mrf.mxu0
      %852 = vmatprep.mubr.bf16.mxu0 0
      %853 = vmatmul.mubr.bf16.gmra.mxu0 %v714
      %v854 = vpop.f32.mrf.mxu0
      %v855 = vadd.f32 0.0, %v854
      %v856 = vpop.f32.mrf.mxu0
      %v857 = vpop.f32.mrf.mxu0
      %v858 = vadd.f32 0.0, %v857
      %v859 = vpop.f32.mrf.mxu0
      %860 = vmatprep.mubr.bf16.mxu0 0
      %861 = vmatmul.mubr.bf16.gmra.mxu0 %v717
      %v862 = vpop.f32.mrf.mxu0
      %v863 = vadd.f32 0.0, %v862
      %v864 = vpop.f32.mrf.mxu0
      %v865 = vpop.f32.mrf.mxu0
      %v866 = vadd.f32 0.0, %v865
      %v867 = vpop.f32.mrf.mxu0
      %868 = vmatprep.mubr.bf16.mxu0 0
      %869 = vmatmul.mubr.bf16.gmra.mxu0 %v720
      %v870 = vpop.f32.mrf.mxu0
      %v871 = vadd.f32 0.0, %v870
      %v872 = vpop.f32.mrf.mxu0
      %v873 = vpop.f32.mrf.mxu0
      %v874 = vadd.f32 0.0, %v873
      %v875 = vpop.f32.mrf.mxu0
      %876 = vmatprep.mubr.bf16.mxu0 0
      %877 = vmatmul.mubr.bf16.gmra.mxu0 %v723
      %v878 = vpop.f32.mrf.mxu0
      %v879 = vadd.f32 0.0, %v878
      %v880 = vpop.f32.mrf.mxu0
      %v881 = vpop.f32.mrf.mxu0
      %v882 = vadd.f32 0.0, %v881
      %v883 = vpop.f32.mrf.mxu0
      %884 = vmatprep.mubr.bf16.mxu0 0
      %885 = vmatmul.mubr.bf16.gmra.mxu0 %v726
      %v886 = vpop.f32.mrf.mxu0
      %v887 = vadd.f32 0.0, %v886
      %v888 = vpop.f32.mrf.mxu0
      %v889 = vpop.f32.mrf.mxu0
      %v890 = vadd.f32 0.0, %v889
      %v891 = vpop.f32.mrf.mxu0
      %892 = vdwg.mxu0
      %v925 = vunpack.c.l.b16 %v533
      %v926 = vunpack.c.l.b16 %v534
      %v927 = vunpack.c.l.b16 %v535
      %v928 = vunpack.c.l.b16 %v536
      %v929 = vunpack.c.l.b16 %v537
      %v930 = vunpack.c.l.b16 %v538
      %v931 = vunpack.c.l.b16 %v539
      %v932 = vunpack.c.l.b16 %v540
      %v933 = vunpack.c.l.b16 %v541
      %v934 = vunpack.c.l.b16 %v542
      %v935 = vunpack.c.l.b16 %v543
      %v936 = vunpack.c.l.b16 %v544
      %v937 = vunpack.c.l.b16 %v545
      %v938 = vunpack.c.l.b16 %v546
      %v939 = vunpack.c.l.b16 %v547
      %v940 = vunpack.c.l.b16 %v548
      %v941 = vunpack.c.l.b16 %v549
      %v942 = vunpack.c.l.b16 %v550
      %v943 = vunpack.c.l.b16 %v551
      %v944 = vunpack.c.l.b16 %v552
      %v945 = vunpack.c.l.b16 %v553
      %v946 = vunpack.c.l.b16 %v554
      %v947 = vunpack.c.l.b16 %v555
      %v948 = vunpack.c.l.b16 %v556
      %v949 = vunpack.c.l.b16 %v557
      %v950 = vunpack.c.l.b16 %v558
      %v951 = vunpack.c.l.b16 %v559
      %v952 = vunpack.c.l.b16 %v560
      %v953 = vunpack.c.l.b16 %v561
      %v954 = vunpack.c.l.b16 %v562
      %v955 = vunpack.c.l.b16 %v563
      %v956 = vunpack.c.l.b16 %v564
      %v957 = vpack.c.b16 %v926, %v925
      %v958 = vpack.c.b16 %v928, %v927
      %v959 = vpack.c.b16 %v930, %v929
      %v960 = vpack.c.b16 %v932, %v931
      %v961 = vpack.c.b16 %v934, %v933
      %v962 = vpack.c.b16 %v936, %v935
      %v963 = vpack.c.b16 %v938, %v937
      %v964 = vpack.c.b16 %v940, %v939
      %v965 = vpack.c.b16 %v942, %v941
      %v966 = vpack.c.b16 %v944, %v943
      %v967 = vpack.c.b16 %v946, %v945
      %v968 = vpack.c.b16 %v948, %v947
      %v969 = vpack.c.b16 %v950, %v949
      %v970 = vpack.c.b16 %v952, %v951
      %v971 = vpack.c.b16 %v954, %v953
      %v972 = vpack.c.b16 %v956, %v955
      %v974 = vsel %vm679, %v957, 0
      %v977 = vsel %vm679, %v958, 0
      %v980 = vsel %vm679, %v959, 0
      %v983 = vsel %vm679, %v960, 0
      %v986 = vsel %vm679, %v961, 0
      %v989 = vsel %vm679, %v962, 0
      %v992 = vsel %vm679, %v963, 0
      %v995 = vsel %vm679, %v964, 0
      %v998 = vsel %vm679, %v965, 0
      %v1001 = vsel %vm679, %v966, 0
      %v1004 = vsel %vm679, %v967, 0
      %v1007 = vsel %vm679, %v968, 0
      %v1010 = vsel %vm679, %v969, 0
      %v1013 = vsel %vm679, %v970, 0
      %v1016 = vsel %vm679, %v971, 0
      %v1019 = vsel %vm679, %v972, 0
      %v1022 = vsel %vm728, %v565, 0
      %1024 = vmatprep.subr.bf16.mxu0 0
      %1025 = vmatpush1.bf16.msra.mxu0 0
      %1026 = vmatprep.subr.bf16.mxu0 0
      %1027 = vmatpush1.bf16.msra.mxu0 0
      %1028 = vmatprep.subr.bf16.mxu0 0
      %1029 = vmatpush1.bf16.msra.mxu0 0
      %1030 = vmatprep.subr.bf16.mxu0 0
      %1031 = vmatpush1.bf16.msra.mxu0 0
      %1032 = vmatprep.subr.bf16.mxu0 0
      %1033 = vmatpush1.bf16.msra.mxu0 0
      %1034 = vmatprep.subr.bf16.mxu0 0
      %1035 = vmatpush1.bf16.msra.mxu0 0
      %1036 = vmatprep.subr.bf16.mxu0 0
      %1037 = vmatpush1.bf16.msra.mxu0 0
      %1038 = vmatprep.subr.bf16.mxu0 0
      %1039 = vmatpush1.bf16.msra.mxu0 %v1022
      %1040 = vmatprep.subr.bf16.mxu0 0
      %1041 = vmatpush2.bf16.msra.mxu0 0
      %1042 = vmatprep.subr.bf16.mxu0 0
      %1043 = vmatpush2.bf16.msra.mxu0 0
      %1044 = vmatprep.subr.bf16.mxu0 0
      %1045 = vmatpush2.bf16.msra.mxu0 0
      %1046 = vmatprep.subr.bf16.mxu0 0
      %1047 = vmatpush2.bf16.msra.mxu0 0
      %1048 = vmatprep.subr.bf16.mxu0 0
      %1049 = vmatpush2.bf16.msra.mxu0 0
      %1050 = vmatprep.subr.bf16.mxu0 0
      %1051 = vmatpush2.bf16.msra.mxu0 0
      %1052 = vmatprep.subr.bf16.mxu0 0
      %1053 = vmatpush2.bf16.msra.mxu0 0
      %1054 = vmatprep.subr.bf16.mxu0 0
      %1055 = vmatpush2.bf16.msra.mxu0 0
      %1056 = vmatprep.mubr.bf16.mxu0 0
      %1057 = vmatmul.mubr.bf16.gmra.mxu0 %v974
      %v1058 = vpop.f32.mrf.mxu0
      %v1059 = vadd.f32 %v767, %v1058
      %v1060 = vpop.f32.mrf.mxu0
      %v1061 = vpop.f32.mrf.mxu0
      %v1062 = vadd.f32 %v770, %v1061
      %v1063 = vpop.f32.mrf.mxu0
      %1064 = vmatprep.mubr.bf16.mxu0 0
      %1065 = vmatmul.mubr.bf16.gmra.mxu0 %v977
      %v1066 = vpop.f32.mrf.mxu0
      %v1067 = vadd.f32 %v775, %v1066
      %v1068 = vpop.f32.mrf.mxu0
      %v1069 = vpop.f32.mrf.mxu0
      %v1070 = vadd.f32 %v778, %v1069
      %v1071 = vpop.f32.mrf.mxu0
      %1072 = vmatprep.mubr.bf16.mxu0 0
      %1073 = vmatmul.mubr.bf16.gmra.mxu0 %v980
      %v1074 = vpop.f32.mrf.mxu0
      %v1075 = vadd.f32 %v783, %v1074
      %v1076 = vpop.f32.mrf.mxu0
      %v1077 = vpop.f32.mrf.mxu0
      %v1078 = vadd.f32 %v786, %v1077
      %v1079 = vpop.f32.mrf.mxu0
      %1080 = vmatprep.mubr.bf16.mxu0 0
      %1081 = vmatmul.mubr.bf16.gmra.mxu0 %v983
      %v1082 = vpop.f32.mrf.mxu0
      %v1083 = vadd.f32 %v791, %v1082
      %v1084 = vpop.f32.mrf.mxu0
      %v1085 = vpop.f32.mrf.mxu0
      %v1086 = vadd.f32 %v794, %v1085
      %v1087 = vpop.f32.mrf.mxu0
      %1088 = vmatprep.mubr.bf16.mxu0 0
      %1089 = vmatmul.mubr.bf16.gmra.mxu0 %v986
      %v1090 = vpop.f32.mrf.mxu0
      %v1091 = vadd.f32 %v799, %v1090
      %v1092 = vpop.f32.mrf.mxu0
      %v1093 = vpop.f32.mrf.mxu0
      %v1094 = vadd.f32 %v802, %v1093
      %v1095 = vpop.f32.mrf.mxu0
      %1096 = vmatprep.mubr.bf16.mxu0 0
      %1097 = vmatmul.mubr.bf16.gmra.mxu0 %v989
      %v1098 = vpop.f32.mrf.mxu0
      %v1099 = vadd.f32 %v807, %v1098
      %v1100 = vpop.f32.mrf.mxu0
      %v1101 = vpop.f32.mrf.mxu0
      %v1102 = vadd.f32 %v810, %v1101
      %v1103 = vpop.f32.mrf.mxu0
      %1104 = vmatprep.mubr.bf16.mxu0 0
      %1105 = vmatmul.mubr.bf16.gmra.mxu0 %v992
      %v1106 = vpop.f32.mrf.mxu0
      %v1107 = vadd.f32 %v815, %v1106
      %v1108 = vpop.f32.mrf.mxu0
      %v1109 = vpop.f32.mrf.mxu0
      %v1110 = vadd.f32 %v818, %v1109
      %v1111 = vpop.f32.mrf.mxu0
      %1112 = vmatprep.mubr.bf16.mxu0 0
      %1113 = vmatmul.mubr.bf16.gmra.mxu0 %v995
      %v1114 = vpop.f32.mrf.mxu0
      %v1115 = vadd.f32 %v823, %v1114
      %v1116 = vpop.f32.mrf.mxu0
      %v1117 = vpop.f32.mrf.mxu0
      %v1118 = vadd.f32 %v826, %v1117
      %v1119 = vpop.f32.mrf.mxu0
      %1120 = vmatprep.mubr.bf16.mxu0 0
      %1121 = vmatmul.mubr.bf16.gmra.mxu0 %v998
      %v1122 = vpop.f32.mrf.mxu0
      %v1123 = vadd.f32 %v831, %v1122
      %v1124 = vpop.f32.mrf.mxu0
      %v1125 = vpop.f32.mrf.mxu0
      %v1126 = vadd.f32 %v834, %v1125
      %v1127 = vpop.f32.mrf.mxu0
      %1128 = vmatprep.mubr.bf16.mxu0 0
      %1129 = vmatmul.mubr.bf16.gmra.mxu0 %v1001
      %v1130 = vpop.f32.mrf.mxu0
      %v1131 = vadd.f32 %v839, %v1130
      %v1132 = vpop.f32.mrf.mxu0
      %v1133 = vpop.f32.mrf.mxu0
      %v1134 = vadd.f32 %v842, %v1133
      %v1135 = vpop.f32.mrf.mxu0
      %1136 = vmatprep.mubr.bf16.mxu0 0
      %1137 = vmatmul.mubr.bf16.gmra.mxu0 %v1004
      %v1138 = vpop.f32.mrf.mxu0
      %v1139 = vadd.f32 %v847, %v1138
      %v1140 = vpop.f32.mrf.mxu0
      %v1141 = vpop.f32.mrf.mxu0
      %v1142 = vadd.f32 %v850, %v1141
      %v1143 = vpop.f32.mrf.mxu0
      %1144 = vmatprep.mubr.bf16.mxu0 0
      %1145 = vmatmul.mubr.bf16.gmra.mxu0 %v1007
      %v1146 = vpop.f32.mrf.mxu0
      %v1147 = vadd.f32 %v855, %v1146
      %v1148 = vpop.f32.mrf.mxu0
      %v1149 = vpop.f32.mrf.mxu0
      %v1150 = vadd.f32 %v858, %v1149
      %v1151 = vpop.f32.mrf.mxu0
      %1152 = vmatprep.mubr.bf16.mxu0 0
      %1153 = vmatmul.mubr.bf16.gmra.mxu0 %v1010
      %v1154 = vpop.f32.mrf.mxu0
      %v1155 = vadd.f32 %v863, %v1154
      %v1156 = vpop.f32.mrf.mxu0
      %v1157 = vpop.f32.mrf.mxu0
      %v1158 = vadd.f32 %v866, %v1157
      %v1159 = vpop.f32.mrf.mxu0
      %1160 = vmatprep.mubr.bf16.mxu0 0
      %1161 = vmatmul.mubr.bf16.gmra.mxu0 %v1013
      %v1162 = vpop.f32.mrf.mxu0
      %v1163 = vadd.f32 %v871, %v1162
      %v1164 = vpop.f32.mrf.mxu0
      %v1165 = vpop.f32.mrf.mxu0
      %v1166 = vadd.f32 %v874, %v1165
      %v1167 = vpop.f32.mrf.mxu0
      %1168 = vmatprep.mubr.bf16.mxu0 0
      %1169 = vmatmul.mubr.bf16.gmra.mxu0 %v1016
      %v1170 = vpop.f32.mrf.mxu0
      %v1171 = vadd.f32 %v879, %v1170
      %v1172 = vpop.f32.mrf.mxu0
      %v1173 = vpop.f32.mrf.mxu0
      %v1174 = vadd.f32 %v882, %v1173
      %v1175 = vpop.f32.mrf.mxu0
      %1176 = vmatprep.mubr.bf16.mxu0 0
      %1177 = vmatmul.mubr.bf16.gmra.mxu0 %v1019
      %v1178 = vpop.f32.mrf.mxu0
      %v1179 = vadd.f32 %v887, %v1178
      %v1180 = vpop.f32.mrf.mxu0
      %v1181 = vpop.f32.mrf.mxu0
      %v1182 = vadd.f32 %v890, %v1181
      %v1183 = vpop.f32.mrf.mxu0
      %1184 = vdwg.mxu0
      %v1185 = vld [vmem:[%s512] sm:$0xf]
      %v1186 = vld [vmem:[%s512 + $0x4] sm:$0xf]
      %v1187 = vld [vmem:[%s512 + $0x8] sm:$0xf]
      %v1188 = vld [vmem:[%s512 + $0xc] sm:$0xf]
      %v1189 = vld [vmem:[%s512 + $0x10] sm:$0xf]
      %v1190 = vld [vmem:[%s512 + $0x14] sm:$0xf]
      %v1191 = vld [vmem:[%s512 + $0x18] sm:$0xf]
      %v1192 = vld [vmem:[%s512 + $0x1c] sm:$0xf]
      %v1193 = vld [vmem:[%s512 + $0x20] sm:$0xf]
      %v1194 = vld [vmem:[%s512 + $0x24] sm:$0xf]
      %v1195 = vld [vmem:[%s512 + $0x28] sm:$0xf]
      %v1196 = vld [vmem:[%s512 + $0x2c] sm:$0xf]
      %v1197 = vld [vmem:[%s512 + $0x30] sm:$0xf]
      %v1198 = vld [vmem:[%s512 + $0x34] sm:$0xf]
      %v1199 = vld [vmem:[%s512 + $0x38] sm:$0xf]
      %v1200 = vld [vmem:[%s512 + $0x3c] sm:$0xf]
      %v1201 = vld [vmem:[%s512 + $0x40] sm:$0xf]
      %v1202 = vld [vmem:[%s512 + $0x44] sm:$0xf]
      %v1203 = vld [vmem:[%s512 + $0x48] sm:$0xf]
      %v1204 = vld [vmem:[%s512 + $0x4c] sm:$0xf]
      %v1205 = vld [vmem:[%s512 + $0x50] sm:$0xf]
      %v1206 = vld [vmem:[%s512 + $0x54] sm:$0xf]
      %v1207 = vld [vmem:[%s512 + $0x58] sm:$0xf]
      %v1208 = vld [vmem:[%s512 + $0x5c] sm:$0xf]
      %v1209 = vld [vmem:[%s512 + $0x60] sm:$0xf]
      %v1210 = vld [vmem:[%s512 + $0x64] sm:$0xf]
      %v1211 = vld [vmem:[%s512 + $0x68] sm:$0xf]
      %v1212 = vld [vmem:[%s512 + $0x6c] sm:$0xf]
      %v1213 = vld [vmem:[%s512 + $0x70] sm:$0xf]
      %v1214 = vld [vmem:[%s512 + $0x74] sm:$0xf]
      %v1215 = vld [vmem:[%s512 + $0x78] sm:$0xf]
      %v1216 = vld [vmem:[%s512 + $0x7c] sm:$0xf]
      %v1217 = vld [vmem:[%s7] sm:$0x3]
      %v1250 = vunpack.c.l.b16 %v1185
      %v1251 = vunpack.c.l.b16 %v1186
      %v1252 = vunpack.c.l.b16 %v1187
      %v1253 = vunpack.c.l.b16 %v1188
      %v1254 = vunpack.c.l.b16 %v1189
      %v1255 = vunpack.c.l.b16 %v1190
      %v1256 = vunpack.c.l.b16 %v1191
      %v1257 = vunpack.c.l.b16 %v1192
      %v1258 = vunpack.c.l.b16 %v1193
      %v1259 = vunpack.c.l.b16 %v1194
      %v1260 = vunpack.c.l.b16 %v1195
      %v1261 = vunpack.c.l.b16 %v1196
      %v1262 = vunpack.c.l.b16 %v1197
      %v1263 = vunpack.c.l.b16 %v1198
      %v1264 = vunpack.c.l.b16 %v1199
      %v1265 = vunpack.c.l.b16 %v1200
      %v1266 = vunpack.c.l.b16 %v1201
      %v1267 = vunpack.c.l.b16 %v1202
      %v1268 = vunpack.c.l.b16 %v1203
      %v1269 = vunpack.c.l.b16 %v1204
      %v1270 = vunpack.c.l.b16 %v1205
      %v1271 = vunpack.c.l.b16 %v1206
      %v1272 = vunpack.c.l.b16 %v1207
      %v1273 = vunpack.c.l.b16 %v1208
      %v1274 = vunpack.c.l.b16 %v1209
      %v1275 = vunpack.c.l.b16 %v1210
      %v1276 = vunpack.c.l.b16 %v1211
      %v1277 = vunpack.c.l.b16 %v1212
      %v1278 = vunpack.c.l.b16 %v1213
      %v1279 = vunpack.c.l.b16 %v1214
      %v1280 = vunpack.c.l.b16 %v1215
      %v1281 = vunpack.c.l.b16 %v1216
      %v1282 = vpack.c.b16 %v1251, %v1250
      %v1283 = vpack.c.b16 %v1253, %v1252
      %v1284 = vpack.c.b16 %v1255, %v1254
      %v1285 = vpack.c.b16 %v1257, %v1256
      %v1286 = vpack.c.b16 %v1259, %v1258
      %v1287 = vpack.c.b16 %v1261, %v1260
      %v1288 = vpack.c.b16 %v1263, %v1262
      %v1289 = vpack.c.b16 %v1265, %v1264
      %v1290 = vpack.c.b16 %v1267, %v1266
      %v1291 = vpack.c.b16 %v1269, %v1268
      %v1292 = vpack.c.b16 %v1271, %v1270
      %v1293 = vpack.c.b16 %v1273, %v1272
      %v1294 = vpack.c.b16 %v1275, %v1274
      %v1295 = vpack.c.b16 %v1277, %v1276
      %v1296 = vpack.c.b16 %v1279, %v1278
      %v1297 = vpack.c.b16 %v1281, %v1280
      %v1299 = vsel %vm679, %v1282, 0
      %v1302 = vsel %vm679, %v1283, 0
      %v1305 = vsel %vm679, %v1284, 0
      %v1308 = vsel %vm679, %v1285, 0
      %v1311 = vsel %vm679, %v1286, 0
      %v1314 = vsel %vm679, %v1287, 0
      %v1317 = vsel %vm679, %v1288, 0
      %v1320 = vsel %vm679, %v1289, 0
      %v1323 = vsel %vm679, %v1290, 0
      %v1326 = vsel %vm679, %v1291, 0
      %v1329 = vsel %vm679, %v1292, 0
      %v1332 = vsel %vm679, %v1293, 0
      %v1335 = vsel %vm679, %v1294, 0
      %v1338 = vsel %vm679, %v1295, 0
      %v1341 = vsel %vm679, %v1296, 0
      %v1344 = vsel %vm679, %v1297, 0
      %v1347 = vsel %vm728, %v1217, 0
      %1349 = vmatprep.subr.bf16.mxu0 0
      %1350 = vmatpush1.bf16.msra.mxu0 0
      %1351 = vmatprep.subr.bf16.mxu0 0
      %1352 = vmatpush1.bf16.msra.mxu0 0
      %1353 = vmatprep.subr.bf16.mxu0 0
      %1354 = vmatpush1.bf16.msra.mxu0 0
      %1355 = vmatprep.subr.bf16.mxu0 0
      %1356 = vmatpush1.bf16.msra.mxu0 0
      %1357 = vmatprep.subr.bf16.mxu0 0
      %1358 = vmatpush1.bf16.msra.mxu0 0
      %1359 = vmatprep.subr.bf16.mxu0 0
      %1360 = vmatpush1.bf16.msra.mxu0 0
      %1361 = vmatprep.subr.bf16.mxu0 0
      %1362 = vmatpush1.bf16.msra.mxu0 0
      %1363 = vmatprep.subr.bf16.mxu0 0
      %1364 = vmatpush1.bf16.msra.mxu0 %v1347
      %1365 = vmatprep.subr.bf16.mxu0 0
      %1366 = vmatpush2.bf16.msra.mxu0 0
      %1367 = vmatprep.subr.bf16.mxu0 0
      %1368 = vmatpush2.bf16.msra.mxu0 0
      %1369 = vmatprep.subr.bf16.mxu0 0
      %1370 = vmatpush2.bf16.msra.mxu0 0
      %1371 = vmatprep.subr.bf16.mxu0 0
      %1372 = vmatpush2.bf16.msra.mxu0 0
      %1373 = vmatprep.subr.bf16.mxu0 0
      %1374 = vmatpush2.bf16.msra.mxu0 0
      %1375 = vmatprep.subr.bf16.mxu0 0
      %1376 = vmatpush2.bf16.msra.mxu0 0
      %1377 = vmatprep.subr.bf16.mxu0 0
      %1378 = vmatpush2.bf16.msra.mxu0 0
      %1379 = vmatprep.subr.bf16.mxu0 0
      %1380 = vmatpush2.bf16.msra.mxu0 0
      %1381 = vmatprep.mubr.bf16.mxu0 0
      %1382 = vmatmul.mubr.bf16.gmra.mxu0 %v1299
      %v1383 = vpop.f32.mrf.mxu0
      %v1384 = vadd.f32 0.0, %v1383
      %v1385 = vpop.f32.mrf.mxu0
      %v1386 = vpop.f32.mrf.mxu0
      %v1387 = vadd.f32 0.0, %v1386
      %v1388 = vpop.f32.mrf.mxu0
      %1389 = vmatprep.mubr.bf16.mxu0 0
      %1390 = vmatmul.mubr.bf16.gmra.mxu0 %v1302
      %v1391 = vpop.f32.mrf.mxu0
      %v1392 = vadd.f32 0.0, %v1391
      %v1393 = vpop.f32.mrf.mxu0
      %v1394 = vpop.f32.mrf.mxu0
      %v1395 = vadd.f32 0.0, %v1394
      %v1396 = vpop.f32.mrf.mxu0
      %1397 = vmatprep.mubr.bf16.mxu0 0
      %1398 = vmatmul.mubr.bf16.gmra.mxu0 %v1305
      %v1399 = vpop.f32.mrf.mxu0
      %v1400 = vadd.f32 0.0, %v1399
      %v1401 = vpop.f32.mrf.mxu0
      %v1402 = vpop.f32.mrf.mxu0
      %v1403 = vadd.f32 0.0, %v1402
      %v1404 = vpop.f32.mrf.mxu0
      %1405 = vmatprep.mubr.bf16.mxu0 0
      %1406 = vmatmul.mubr.bf16.gmra.mxu0 %v1308
      %v1407 = vpop.f32.mrf.mxu0
      %v1408 = vadd.f32 0.0, %v1407
      %v1409 = vpop.f32.mrf.mxu0
      %v1410 = vpop.f32.mrf.mxu0
      %v1411 = vadd.f32 0.0, %v1410
      %v1412 = vpop.f32.mrf.mxu0
      %1413 = vmatprep.mubr.bf16.mxu0 0
      %1414 = vmatmul.mubr.bf16.gmra.mxu0 %v1311
      %v1415 = vpop.f32.mrf.mxu0
      %v1416 = vadd.f32 0.0, %v1415
      %v1417 = vpop.f32.mrf.mxu0
      %v1418 = vpop.f32.mrf.mxu0
      %v1419 = vadd.f32 0.0, %v1418
      %v1420 = vpop.f32.mrf.mxu0
      %1421 = vmatprep.mubr.bf16.mxu0 0
      %1422 = vmatmul.mubr.bf16.gmra.mxu0 %v1314
      %v1423 = vpop.f32.mrf.mxu0
      %v1424 = vadd.f32 0.0, %v1423
      %v1425 = vpop.f32.mrf.mxu0
      %v1426 = vpop.f32.mrf.mxu0
      %v1427 = vadd.f32 0.0, %v1426
      %v1428 = vpop.f32.mrf.mxu0
      %1429 = vmatprep.mubr.bf16.mxu0 0
      %1430 = vmatmul.mubr.bf16.gmra.mxu0 %v1317
      %v1431 = vpop.f32.mrf.mxu0
      %v1432 = vadd.f32 0.0, %v1431
      %v1433 = vpop.f32.mrf.mxu0
      %v1434 = vpop.f32.mrf.mxu0
      %v1435 = vadd.f32 0.0, %v1434
      %v1436 = vpop.f32.mrf.mxu0
      %1437 = vmatprep.mubr.bf16.mxu0 0
      %1438 = vmatmul.mubr.bf16.gmra.mxu0 %v1320
      %v1439 = vpop.f32.mrf.mxu0
      %v1440 = vadd.f32 0.0, %v1439
      %v1441 = vpop.f32.mrf.mxu0
      %v1442 = vpop.f32.mrf.mxu0
      %v1443 = vadd.f32 0.0, %v1442
      %v1444 = vpop.f32.mrf.mxu0
      %1445 = vmatprep.mubr.bf16.mxu0 0
      %1446 = vmatmul.mubr.bf16.gmra.mxu0 %v1323
      %v1447 = vpop.f32.mrf.mxu0
      %v1448 = vadd.f32 0.0, %v1447
      %v1449 = vpop.f32.mrf.mxu0
      %v1450 = vpop.f32.mrf.mxu0
      %v1451 = vadd.f32 0.0, %v1450
      %v1452 = vpop.f32.mrf.mxu0
      %1453 = vmatprep.mubr.bf16.mxu0 0
      %1454 = vmatmul.mubr.bf16.gmra.mxu0 %v1326
      %v1455 = vpop.f32.mrf.mxu0
      %v1456 = vadd.f32 0.0, %v1455
      %v1457 = vpop.f32.mrf.mxu0
      %v1458 = vpop.f32.mrf.mxu0
      %v1459 = vadd.f32 0.0, %v1458
      %v1460 = vpop.f32.mrf.mxu0
      %1461 = vmatprep.mubr.bf16.mxu0 0
      %1462 = vmatmul.mubr.bf16.gmra.mxu0 %v1329
      %v1463 = vpop.f32.mrf.mxu0
      %v1464 = vadd.f32 0.0, %v1463
      %v1465 = vpop.f32.mrf.mxu0
      %v1466 = vpop.f32.mrf.mxu0
      %v1467 = vadd.f32 0.0, %v1466
      %v1468 = vpop.f32.mrf.mxu0
      %1469 = vmatprep.mubr.bf16.mxu0 0
      %1470 = vmatmul.mubr.bf16.gmra.mxu0 %v1332
      %v1471 = vpop.f32.mrf.mxu0
      %v1472 = vadd.f32 0.0, %v1471
      %v1473 = vpop.f32.mrf.mxu0
      %v1474 = vpop.f32.mrf.mxu0
      %v1475 = vadd.f32 0.0, %v1474
      %v1476 = vpop.f32.mrf.mxu0
      %1477 = vmatprep.mubr.bf16.mxu0 0
      %1478 = vmatmul.mubr.bf16.gmra.mxu0 %v1335
      %v1479 = vpop.f32.mrf.mxu0
      %v1480 = vadd.f32 0.0, %v1479
      %v1481 = vpop.f32.mrf.mxu0
      %v1482 = vpop.f32.mrf.mxu0
      %v1483 = vadd.f32 0.0, %v1482
      %v1484 = vpop.f32.mrf.mxu0
      %1485 = vmatprep.mubr.bf16.mxu0 0
      %1486 = vmatmul.mubr.bf16.gmra.mxu0 %v1338
      %v1487 = vpop.f32.mrf.mxu0
      %v1488 = vadd.f32 0.0, %v1487
      %v1489 = vpop.f32.mrf.mxu0
      %v1490 = vpop.f32.mrf.mxu0
      %v1491 = vadd.f32 0.0, %v1490
      %v1492 = vpop.f32.mrf.mxu0
      %1493 = vmatprep.mubr.bf16.mxu0 0
      %1494 = vmatmul.mubr.bf16.gmra.mxu0 %v1341
      %v1495 = vpop.f32.mrf.mxu0
      %v1496 = vadd.f32 0.0, %v1495
      %v1497 = vpop.f32.mrf.mxu0
      %v1498 = vpop.f32.mrf.mxu0
      %v1499 = vadd.f32 0.0, %v1498
      %v1500 = vpop.f32.mrf.mxu0
      %1501 = vmatprep.mubr.bf16.mxu0 0
      %1502 = vmatmul.mubr.bf16.gmra.mxu0 %v1344
      %v1503 = vpop.f32.mrf.mxu0
      %v1504 = vadd.f32 0.0, %v1503
      %v1505 = vpop.f32.mrf.mxu0
      %v1506 = vpop.f32.mrf.mxu0
      %v1507 = vadd.f32 0.0, %v1506
      %v1508 = vpop.f32.mrf.mxu0
      %1509 = vdwg.mxu0
      %v1510 = vadd.f32 %v1059, %v1384
      %v1511 = vadd.f32 %v1062, %v1387
      %v1512 = vadd.f32 %v1067, %v1392
      %v1513 = vadd.f32 %v1070, %v1395
      %v1514 = vadd.f32 %v1075, %v1400
      %v1515 = vadd.f32 %v1078, %v1403
      %v1516 = vadd.f32 %v1083, %v1408
      %v1517 = vadd.f32 %v1086, %v1411
      %v1518 = vadd.f32 %v1091, %v1416
      %v1519 = vadd.f32 %v1094, %v1419
      %v1520 = vadd.f32 %v1099, %v1424
      %v1521 = vadd.f32 %v1102, %v1427
      %v1522 = vadd.f32 %v1107, %v1432
      %v1523 = vadd.f32 %v1110, %v1435
      %v1524 = vadd.f32 %v1115, %v1440
      %v1525 = vadd.f32 %v1118, %v1443
      %v1526 = vadd.f32 %v1123, %v1448
      %v1527 = vadd.f32 %v1126, %v1451
      %v1528 = vadd.f32 %v1131, %v1456
      %v1529 = vadd.f32 %v1134, %v1459
      %v1530 = vadd.f32 %v1139, %v1464
      %v1531 = vadd.f32 %v1142, %v1467
      %v1532 = vadd.f32 %v1147, %v1472
      %v1533 = vadd.f32 %v1150, %v1475
      %v1534 = vadd.f32 %v1155, %v1480
      %v1535 = vadd.f32 %v1158, %v1483
      %v1536 = vadd.f32 %v1163, %v1488
      %v1537 = vadd.f32 %v1166, %v1491
      %v1538 = vadd.f32 %v1171, %v1496
      %v1539 = vadd.f32 %v1174, %v1499
      %v1540 = vadd.f32 %v1179, %v1504
      %v1541 = vadd.f32 %v1182, %v1507
      %v1542 = vld [vmem:[%s518] sm:$0xf]
      %v1543 = vld [vmem:[%s518 + $0x4] sm:$0xf]
      %v1544 = vld [vmem:[%s518 + $0x8] sm:$0xf]
      %v1545 = vld [vmem:[%s518 + $0xc] sm:$0xf]
      %v1546 = vld [vmem:[%s518 + $0x10] sm:$0xf]
      %v1547 = vld [vmem:[%s518 + $0x14] sm:$0xf]
      %v1548 = vld [vmem:[%s518 + $0x18] sm:$0xf]
      %v1549 = vld [vmem:[%s518 + $0x1c] sm:$0xf]
      %v1550 = vld [vmem:[%s518 + $0x20] sm:$0xf]
      %v1551 = vld [vmem:[%s518 + $0x24] sm:$0xf]
      %v1552 = vld [vmem:[%s518 + $0x28] sm:$0xf]
      %v1553 = vld [vmem:[%s518 + $0x2c] sm:$0xf]
      %v1554 = vld [vmem:[%s518 + $0x30] sm:$0xf]
      %v1555 = vld [vmem:[%s518 + $0x34] sm:$0xf]
      %v1556 = vld [vmem:[%s518 + $0x38] sm:$0xf]
      %v1557 = vld [vmem:[%s518 + $0x3c] sm:$0xf]
      %v1558 = vld [vmem:[%s518 + $0x40] sm:$0xf]
      %v1559 = vld [vmem:[%s518 + $0x44] sm:$0xf]
      %v1560 = vld [vmem:[%s518 + $0x48] sm:$0xf]
      %v1561 = vld [vmem:[%s518 + $0x4c] sm:$0xf]
      %v1562 = vld [vmem:[%s518 + $0x50] sm:$0xf]
      %v1563 = vld [vmem:[%s518 + $0x54] sm:$0xf]
      %v1564 = vld [vmem:[%s518 + $0x58] sm:$0xf]
      %v1565 = vld [vmem:[%s518 + $0x5c] sm:$0xf]
      %v1566 = vld [vmem:[%s518 + $0x60] sm:$0xf]
      %v1567 = vld [vmem:[%s518 + $0x64] sm:$0xf]
      %v1568 = vld [vmem:[%s518 + $0x68] sm:$0xf]
      %v1569 = vld [vmem:[%s518 + $0x6c] sm:$0xf]
      %v1570 = vld [vmem:[%s518 + $0x70] sm:$0xf]
      %v1571 = vld [vmem:[%s518 + $0x74] sm:$0xf]
      %v1572 = vld [vmem:[%s518 + $0x78] sm:$0xf]
      %v1573 = vld [vmem:[%s518 + $0x7c] sm:$0xf]
      %v1574 = vld [vmem:[%s8] sm:$0x3]
      %v1607 = vunpack.c.l.b16 %v1542
      %v1608 = vunpack.c.l.b16 %v1543
      %v1609 = vunpack.c.l.b16 %v1544
      %v1610 = vunpack.c.l.b16 %v1545
      %v1611 = vunpack.c.l.b16 %v1546
      %v1612 = vunpack.c.l.b16 %v1547
      %v1613 = vunpack.c.l.b16 %v1548
      %v1614 = vunpack.c.l.b16 %v1549
      %v1615 = vunpack.c.l.b16 %v1550
      %v1616 = vunpack.c.l.b16 %v1551
      %v1617 = vunpack.c.l.b16 %v1552
      %v1618 = vunpack.c.l.b16 %v1553
      %v1619 = vunpack.c.l.b16 %v1554
      %v1620 = vunpack.c.l.b16 %v1555
      %v1621 = vunpack.c.l.b16 %v1556
      %v1622 = vunpack.c.l.b16 %v1557
      %v1623 = vunpack.c.l.b16 %v1558
      %v1624 = vunpack.c.l.b16 %v1559
      %v1625 = vunpack.c.l.b16 %v1560
      %v1626 = vunpack.c.l.b16 %v1561
      %v1627 = vunpack.c.l.b16 %v1562
      %v1628 = vunpack.c.l.b16 %v1563
      %v1629 = vunpack.c.l.b16 %v1564
      %v1630 = vunpack.c.l.b16 %v1565
      %v1631 = vunpack.c.l.b16 %v1566
      %v1632 = vunpack.c.l.b16 %v1567
      %v1633 = vunpack.c.l.b16 %v1568
      %v1634 = vunpack.c.l.b16 %v1569
      %v1635 = vunpack.c.l.b16 %v1570
      %v1636 = vunpack.c.l.b16 %v1571
      %v1637 = vunpack.c.l.b16 %v1572
      %v1638 = vunpack.c.l.b16 %v1573
      %v1639 = vpack.c.b16 %v1608, %v1607
      %v1640 = vpack.c.b16 %v1610, %v1609
      %v1641 = vpack.c.b16 %v1612, %v1611
      %v1642 = vpack.c.b16 %v1614, %v1613
      %v1643 = vpack.c.b16 %v1616, %v1615
      %v1644 = vpack.c.b16 %v1618, %v1617
      %v1645 = vpack.c.b16 %v1620, %v1619
      %v1646 = vpack.c.b16 %v1622, %v1621
      %v1647 = vpack.c.b16 %v1624, %v1623
      %v1648 = vpack.c.b16 %v1626, %v1625
      %v1649 = vpack.c.b16 %v1628, %v1627
      %v1650 = vpack.c.b16 %v1630, %v1629
      %v1651 = vpack.c.b16 %v1632, %v1631
      %v1652 = vpack.c.b16 %v1634, %v1633
      %v1653 = vpack.c.b16 %v1636, %v1635
      %v1654 = vpack.c.b16 %v1638, %v1637
      %v1656 = vsel %vm679, %v1639, 0
      %v1659 = vsel %vm679, %v1640, 0
      %v1662 = vsel %vm679, %v1641, 0
      %v1665 = vsel %vm679, %v1642, 0
      %v1668 = vsel %vm679, %v1643, 0
      %v1671 = vsel %vm679, %v1644, 0
      %v1674 = vsel %vm679, %v1645, 0
      %v1677 = vsel %vm679, %v1646, 0
      %v1680 = vsel %vm679, %v1647, 0
      %v1683 = vsel %vm679, %v1648, 0
      %v1686 = vsel %vm679, %v1649, 0
      %v1689 = vsel %vm679, %v1650, 0
      %v1692 = vsel %vm679, %v1651, 0
      %v1695 = vsel %vm679, %v1652, 0
      %v1698 = vsel %vm679, %v1653, 0
      %v1701 = vsel %vm679, %v1654, 0
      %v1704 = vsel %vm728, %v1574, 0
      %1706 = vmatprep.subr.bf16.mxu0 0
      %1707 = vmatpush1.bf16.msra.mxu0 0
      %1708 = vmatprep.subr.bf16.mxu0 0
      %1709 = vmatpush1.bf16.msra.mxu0 0
      %1710 = vmatprep.subr.bf16.mxu0 0
      %1711 = vmatpush1.bf16.msra.mxu0 0
      %1712 = vmatprep.subr.bf16.mxu0 0
      %1713 = vmatpush1.bf16.msra.mxu0 0
      %1714 = vmatprep.subr.bf16.mxu0 0
      %1715 = vmatpush1.bf16.msra.mxu0 0
      %1716 = vmatprep.subr.bf16.mxu0 0
      %1717 = vmatpush1.bf16.msra.mxu0 0
      %1718 = vmatprep.subr.bf16.mxu0 0
      %1719 = vmatpush1.bf16.msra.mxu0 0
      %1720 = vmatprep.subr.bf16.mxu0 0
      %1721 = vmatpush1.bf16.msra.mxu0 %v1704
      %1722 = vmatprep.subr.bf16.mxu0 0
      %1723 = vmatpush2.bf16.msra.mxu0 0
      %1724 = vmatprep.subr.bf16.mxu0 0
      %1725 = vmatpush2.bf16.msra.mxu0 0
      %1726 = vmatprep.subr.bf16.mxu0 0
      %1727 = vmatpush2.bf16.msra.mxu0 0
      %1728 = vmatprep.subr.bf16.mxu0 0
      %1729 = vmatpush2.bf16.msra.mxu0 0
      %1730 = vmatprep.subr.bf16.mxu0 0
      %1731 = vmatpush2.bf16.msra.mxu0 0
      %1732 = vmatprep.subr.bf16.mxu0 0
      %1733 = vmatpush2.bf16.msra.mxu0 0
      %1734 = vmatprep.subr.bf16.mxu0 0
      %1735 = vmatpush2.bf16.msra.mxu0 0
      %1736 = vmatprep.subr.bf16.mxu0 0
      %1737 = vmatpush2.bf16.msra.mxu0 0
      %1738 = vmatprep.mubr.bf16.mxu0 0
      %1739 = vmatmul.mubr.bf16.gmra.mxu0 %v1656
      %v1740 = vpop.f32.mrf.mxu0
      %v1741 = vadd.f32 0.0, %v1740
      %v1742 = vpop.f32.mrf.mxu0
      %v1743 = vpop.f32.mrf.mxu0
      %v1744 = vadd.f32 0.0, %v1743
      %v1745 = vpop.f32.mrf.mxu0
      %1746 = vmatprep.mubr.bf16.mxu0 0
      %1747 = vmatmul.mubr.bf16.gmra.mxu0 %v1659
      %v1748 = vpop.f32.mrf.mxu0
      %v1749 = vadd.f32 0.0, %v1748
      %v1750 = vpop.f32.mrf.mxu0
      %v1751 = vpop.f32.mrf.mxu0
      %v1752 = vadd.f32 0.0, %v1751
      %v1753 = vpop.f32.mrf.mxu0
      %1754 = vmatprep.mubr.bf16.mxu0 0
      %1755 = vmatmul.mubr.bf16.gmra.mxu0 %v1662
      %v1756 = vpop.f32.mrf.mxu0
      %v1757 = vadd.f32 0.0, %v1756
      %v1758 = vpop.f32.mrf.mxu0
      %v1759 = vpop.f32.mrf.mxu0
      %v1760 = vadd.f32 0.0, %v1759
      %v1761 = vpop.f32.mrf.mxu0
      %1762 = vmatprep.mubr.bf16.mxu0 0
      %1763 = vmatmul.mubr.bf16.gmra.mxu0 %v1665
      %v1764 = vpop.f32.mrf.mxu0
      %v1765 = vadd.f32 0.0, %v1764
      %v1766 = vpop.f32.mrf.mxu0
      %v1767 = vpop.f32.mrf.mxu0
      %v1768 = vadd.f32 0.0, %v1767
      %v1769 = vpop.f32.mrf.mxu0
      %1770 = vmatprep.mubr.bf16.mxu0 0
      %1771 = vmatmul.mubr.bf16.gmra.mxu0 %v1668
      %v1772 = vpop.f32.mrf.mxu0
      %v1773 = vadd.f32 0.0, %v1772
      %v1774 = vpop.f32.mrf.mxu0
      %v1775 = vpop.f32.mrf.mxu0
      %v1776 = vadd.f32 0.0, %v1775
      %v1777 = vpop.f32.mrf.mxu0
      %1778 = vmatprep.mubr.bf16.mxu0 0
      %1779 = vmatmul.mubr.bf16.gmra.mxu0 %v1671
      %v1780 = vpop.f32.mrf.mxu0
      %v1781 = vadd.f32 0.0, %v1780
      %v1782 = vpop.f32.mrf.mxu0
      %v1783 = vpop.f32.mrf.mxu0
      %v1784 = vadd.f32 0.0, %v1783
      %v1785 = vpop.f32.mrf.mxu0
      %1786 = vmatprep.mubr.bf16.mxu0 0
      %1787 = vmatmul.mubr.bf16.gmra.mxu0 %v1674
      %v1788 = vpop.f32.mrf.mxu0
      %v1789 = vadd.f32 0.0, %v1788
      %v1790 = vpop.f32.mrf.mxu0
      %v1791 = vpop.f32.mrf.mxu0
      %v1792 = vadd.f32 0.0, %v1791
      %v1793 = vpop.f32.mrf.mxu0
      %1794 = vmatprep.mubr.bf16.mxu0 0
      %1795 = vmatmul.mubr.bf16.gmra.mxu0 %v1677
      %v1796 = vpop.f32.mrf.mxu0
      %v1797 = vadd.f32 0.0, %v1796
      %v1798 = vpop.f32.mrf.mxu0
      %v1799 = vpop.f32.mrf.mxu0
      %v1800 = vadd.f32 0.0, %v1799
      %v1801 = vpop.f32.mrf.mxu0
      %1802 = vmatprep.mubr.bf16.mxu0 0
      %1803 = vmatmul.mubr.bf16.gmra.mxu0 %v1680
      %v1804 = vpop.f32.mrf.mxu0
      %v1805 = vadd.f32 0.0, %v1804
      %v1806 = vpop.f32.mrf.mxu0
      %v1807 = vpop.f32.mrf.mxu0
      %v1808 = vadd.f32 0.0, %v1807
      %v1809 = vpop.f32.mrf.mxu0
      %1810 = vmatprep.mubr.bf16.mxu0 0
      %1811 = vmatmul.mubr.bf16.gmra.mxu0 %v1683
      %v1812 = vpop.f32.mrf.mxu0
      %v1813 = vadd.f32 0.0, %v1812
      %v1814 = vpop.f32.mrf.mxu0
      %v1815 = vpop.f32.mrf.mxu0
      %v1816 = vadd.f32 0.0, %v1815
      %v1817 = vpop.f32.mrf.mxu0
      %1818 = vmatprep.mubr.bf16.mxu0 0
      %1819 = vmatmul.mubr.bf16.gmra.mxu0 %v1686
      %v1820 = vpop.f32.mrf.mxu0
      %v1821 = vadd.f32 0.0, %v1820
      %v1822 = vpop.f32.mrf.mxu0
      %v1823 = vpop.f32.mrf.mxu0
      %v1824 = vadd.f32 0.0, %v1823
      %v1825 = vpop.f32.mrf.mxu0
      %1826 = vmatprep.mubr.bf16.mxu0 0
      %1827 = vmatmul.mubr.bf16.gmra.mxu0 %v1689
      %v1828 = vpop.f32.mrf.mxu0
      %v1829 = vadd.f32 0.0, %v1828
      %v1830 = vpop.f32.mrf.mxu0
      %v1831 = vpop.f32.mrf.mxu0
      %v1832 = vadd.f32 0.0, %v1831
      %v1833 = vpop.f32.mrf.mxu0
      %1834 = vmatprep.mubr.bf16.mxu0 0
      %1835 = vmatmul.mubr.bf16.gmra.mxu0 %v1692
      %v1836 = vpop.f32.mrf.mxu0
      %v1837 = vadd.f32 0.0, %v1836
      %v1838 = vpop.f32.mrf.mxu0
      %v1839 = vpop.f32.mrf.mxu0
      %v1840 = vadd.f32 0.0, %v1839
      %v1841 = vpop.f32.mrf.mxu0
      %1842 = vmatprep.mubr.bf16.mxu0 0
      %1843 = vmatmul.mubr.bf16.gmra.mxu0 %v1695
      %v1844 = vpop.f32.mrf.mxu0
      %v1845 = vadd.f32 0.0, %v1844
      %v1846 = vpop.f32.mrf.mxu0
      %v1847 = vpop.f32.mrf.mxu0
      %v1848 = vadd.f32 0.0, %v1847
      %v1849 = vpop.f32.mrf.mxu0
      %1850 = vmatprep.mubr.bf16.mxu0 0
      %1851 = vmatmul.mubr.bf16.gmra.mxu0 %v1698
      %v1852 = vpop.f32.mrf.mxu0
      %v1853 = vadd.f32 0.0, %v1852
      %v1854 = vpop.f32.mrf.mxu0
      %v1855 = vpop.f32.mrf.mxu0
      %v1856 = vadd.f32 0.0, %v1855
      %v1857 = vpop.f32.mrf.mxu0
      %1858 = vmatprep.mubr.bf16.mxu0 0
      %1859 = vmatmul.mubr.bf16.gmra.mxu0 %v1701
      %v1860 = vpop.f32.mrf.mxu0
      %v1861 = vadd.f32 0.0, %v1860
      %v1862 = vpop.f32.mrf.mxu0
      %v1863 = vpop.f32.mrf.mxu0
      %v1864 = vadd.f32 0.0, %v1863
      %v1865 = vpop.f32.mrf.mxu0
      %1866 = vdwg.mxu0
      %v1867 = vadd.f32 %v1510, %v1741
      %v1868 = vadd.f32 %v1511, %v1744
      %v1869 = vadd.f32 %v1512, %v1749
      %v1870 = vadd.f32 %v1513, %v1752
      %v1871 = vadd.f32 %v1514, %v1757
      %v1872 = vadd.f32 %v1515, %v1760
      %v1873 = vadd.f32 %v1516, %v1765
      %v1874 = vadd.f32 %v1517, %v1768
      %v1875 = vadd.f32 %v1518, %v1773
      %v1876 = vadd.f32 %v1519, %v1776
      %v1877 = vadd.f32 %v1520, %v1781
      %v1878 = vadd.f32 %v1521, %v1784
      %v1879 = vadd.f32 %v1522, %v1789
      %v1880 = vadd.f32 %v1523, %v1792
      %v1881 = vadd.f32 %v1524, %v1797
      %v1882 = vadd.f32 %v1525, %v1800
      %v1883 = vadd.f32 %v1526, %v1805
      %v1884 = vadd.f32 %v1527, %v1808
      %v1885 = vadd.f32 %v1528, %v1813
      %v1886 = vadd.f32 %v1529, %v1816
      %v1887 = vadd.f32 %v1530, %v1821
      %v1888 = vadd.f32 %v1531, %v1824
      %v1889 = vadd.f32 %v1532, %v1829
      %v1890 = vadd.f32 %v1533, %v1832
      %v1891 = vadd.f32 %v1534, %v1837
      %v1892 = vadd.f32 %v1535, %v1840
      %v1893 = vadd.f32 %v1536, %v1845
      %v1894 = vadd.f32 %v1537, %v1848
      %v1895 = vadd.f32 %v1538, %v1853
      %v1896 = vadd.f32 %v1539, %v1856
      %v1897 = vadd.f32 %v1540, %v1861
      %v1898 = vadd.f32 %v1541, %v1864
      %v1899 = vld [vmem:[%s524] sm:$0xf]
      %v1900 = vld [vmem:[%s524 + $0x4] sm:$0xf]
      %v1901 = vld [vmem:[%s524 + $0x8] sm:$0xf]
      %v1902 = vld [vmem:[%s524 + $0xc] sm:$0xf]
      %v1903 = vld [vmem:[%s524 + $0x10] sm:$0xf]
      %v1904 = vld [vmem:[%s524 + $0x14] sm:$0xf]
      %v1905 = vld [vmem:[%s524 + $0x18] sm:$0xf]
      %v1906 = vld [vmem:[%s524 + $0x1c] sm:$0xf]
      %v1907 = vld [vmem:[%s524 + $0x20] sm:$0xf]
      %v1908 = vld [vmem:[%s524 + $0x24] sm:$0xf]
      %v1909 = vld [vmem:[%s524 + $0x28] sm:$0xf]
      %v1910 = vld [vmem:[%s524 + $0x2c] sm:$0xf]
      %v1911 = vld [vmem:[%s524 + $0x30] sm:$0xf]
      %v1912 = vld [vmem:[%s524 + $0x34] sm:$0xf]
      %v1913 = vld [vmem:[%s524 + $0x38] sm:$0xf]
      %v1914 = vld [vmem:[%s524 + $0x3c] sm:$0xf]
      %v1915 = vld [vmem:[%s524 + $0x40] sm:$0xf]
      %v1916 = vld [vmem:[%s524 + $0x44] sm:$0xf]
      %v1917 = vld [vmem:[%s524 + $0x48] sm:$0xf]
      %v1918 = vld [vmem:[%s524 + $0x4c] sm:$0xf]
      %v1919 = vld [vmem:[%s524 + $0x50] sm:$0xf]
      %v1920 = vld [vmem:[%s524 + $0x54] sm:$0xf]
      %v1921 = vld [vmem:[%s524 + $0x58] sm:$0xf]
      %v1922 = vld [vmem:[%s524 + $0x5c] sm:$0xf]
      %v1923 = vld [vmem:[%s524 + $0x60] sm:$0xf]
      %v1924 = vld [vmem:[%s524 + $0x64] sm:$0xf]
      %v1925 = vld [vmem:[%s524 + $0x68] sm:$0xf]
      %v1926 = vld [vmem:[%s524 + $0x6c] sm:$0xf]
      %v1927 = vld [vmem:[%s524 + $0x70] sm:$0xf]
      %v1928 = vld [vmem:[%s524 + $0x74] sm:$0xf]
      %v1929 = vld [vmem:[%s524 + $0x78] sm:$0xf]
      %v1930 = vld [vmem:[%s524 + $0x7c] sm:$0xf]
      %v1931 = vld [vmem:[%s9] sm:$0xf]
      %v1932 = vld [vmem:[%s9 + $0x4] sm:$0xf]
      %v1965 = vunpack.c.l.b16 %v1899
      %v1966 = vunpack.c.l.b16 %v1900
      %v1967 = vunpack.c.l.b16 %v1901
      %v1968 = vunpack.c.l.b16 %v1902
      %v1969 = vunpack.c.l.b16 %v1903
      %v1970 = vunpack.c.l.b16 %v1904
      %v1971 = vunpack.c.l.b16 %v1905
      %v1972 = vunpack.c.l.b16 %v1906
      %v1973 = vunpack.c.l.b16 %v1907
      %v1974 = vunpack.c.l.b16 %v1908
      %v1975 = vunpack.c.l.b16 %v1909
      %v1976 = vunpack.c.l.b16 %v1910
      %v1977 = vunpack.c.l.b16 %v1911
      %v1978 = vunpack.c.l.b16 %v1912
      %v1979 = vunpack.c.l.b16 %v1913
      %v1980 = vunpack.c.l.b16 %v1914
      %v1981 = vunpack.c.l.b16 %v1915
      %v1982 = vunpack.c.l.b16 %v1916
      %v1983 = vunpack.c.l.b16 %v1917
      %v1984 = vunpack.c.l.b16 %v1918
      %v1985 = vunpack.c.l.b16 %v1919
      %v1986 = vunpack.c.l.b16 %v1920
      %v1987 = vunpack.c.l.b16 %v1921
      %v1988 = vunpack.c.l.b16 %v1922
      %v1989 = vunpack.c.l.b16 %v1923
      %v1990 = vunpack.c.l.b16 %v1924
      %v1991 = vunpack.c.l.b16 %v1925
      %v1992 = vunpack.c.l.b16 %v1926
      %v1993 = vunpack.c.l.b16 %v1927
      %v1994 = vunpack.c.l.b16 %v1928
      %v1995 = vunpack.c.l.b16 %v1929
      %v1996 = vunpack.c.l.b16 %v1930
      %v1997 = vpack.c.b16 %v1966, %v1965
      %v1998 = vpack.c.b16 %v1968, %v1967
      %v1999 = vpack.c.b16 %v1970, %v1969
      %v2000 = vpack.c.b16 %v1972, %v1971
      %v2001 = vpack.c.b16 %v1974, %v1973
      %v2002 = vpack.c.b16 %v1976, %v1975
      %v2003 = vpack.c.b16 %v1978, %v1977
      %v2004 = vpack.c.b16 %v1980, %v1979
      %v2005 = vpack.c.b16 %v1982, %v1981
      %v2006 = vpack.c.b16 %v1984, %v1983
      %v2007 = vpack.c.b16 %v1986, %v1985
      %v2008 = vpack.c.b16 %v1988, %v1987
      %v2009 = vpack.c.b16 %v1990, %v1989
      %v2010 = vpack.c.b16 %v1992, %v1991
      %v2011 = vpack.c.b16 %v1994, %v1993
      %v2012 = vpack.c.b16 %v1996, %v1995
      %v2015 = vunpack.c.l.b16 %v1931
      %v2016 = vunpack.c.l.b16 %v1932
      %v2017 = vpack.c.b16 %v2016, %v2015
      %vm2019 = vcmask 130048
      %v2021 = vsel %vm2019, %v1997, 0
      %v2024 = vsel %vm2019, %v1998, 0
      %v2027 = vsel %vm2019, %v1999, 0
      %v2030 = vsel %vm2019, %v2000, 0
      %v2033 = vsel %vm2019, %v2001, 0
      %v2036 = vsel %vm2019, %v2002, 0
      %v2039 = vsel %vm2019, %v2003, 0
      %v2042 = vsel %vm2019, %v2004, 0
      %v2045 = vsel %vm2019, %v2005, 0
      %v2048 = vsel %vm2019, %v2006, 0
      %v2051 = vsel %vm2019, %v2007, 0
      %v2054 = vsel %vm2019, %v2008, 0
      %v2057 = vsel %vm2019, %v2009, 0
      %v2060 = vsel %vm2019, %v2010, 0
      %v2063 = vsel %vm2019, %v2011, 0
      %v2066 = vsel %vm2019, %v2012, 0
      %2068 = vmatprep.subr.bf16.mxu0 0
      %2069 = vmatpush1.bf16.msra.mxu0 0
      %2070 = vmatprep.subr.bf16.mxu0 0
      %2071 = vmatpush1.bf16.msra.mxu0 0
      %2072 = vmatprep.subr.bf16.mxu0 0
      %2073 = vmatpush1.bf16.msra.mxu0 0
      %2074 = vmatprep.subr.bf16.mxu0 0
      %2075 = vmatpush1.bf16.msra.mxu0 0
      %2076 = vmatprep.subr.bf16.mxu0 0
      %2077 = vmatpush1.bf16.msra.mxu0 0
      %2078 = vmatprep.subr.bf16.mxu0 0
      %2079 = vmatpush1.bf16.msra.mxu0 0
      %2080 = vmatprep.subr.bf16.mxu0 0
      %2081 = vmatpush1.bf16.msra.mxu0 0
      %2082 = vmatprep.subr.bf16.mxu0 0
      %2083 = vmatpush1.bf16.msra.mxu0 %v2017
      %2084 = vmatprep.subr.bf16.mxu0 0
      %2085 = vmatpush2.bf16.msra.mxu0 0
      %2086 = vmatprep.subr.bf16.mxu0 0
      %2087 = vmatpush2.bf16.msra.mxu0 0
      %2088 = vmatprep.subr.bf16.mxu0 0
      %2089 = vmatpush2.bf16.msra.mxu0 0
      %2090 = vmatprep.subr.bf16.mxu0 0
      %2091 = vmatpush2.bf16.msra.mxu0 0
      %2092 = vmatprep.subr.bf16.mxu0 0
      %2093 = vmatpush2.bf16.msra.mxu0 0
      %2094 = vmatprep.subr.bf16.mxu0 0
      %2095 = vmatpush2.bf16.msra.mxu0 0
      %2096 = vmatprep.subr.bf16.mxu0 0
      %2097 = vmatpush2.bf16.msra.mxu0 0
      %2098 = vmatprep.subr.bf16.mxu0 0
      %2099 = vmatpush2.bf16.msra.mxu0 0
      %2100 = vmatprep.mubr.bf16.mxu0 0
      %2101 = vmatmul.mubr.bf16.gmra.mxu0 %v2021
      %v2102 = vpop.f32.mrf.mxu0
      %v2103 = vadd.f32 0.0, %v2102
      %v2104 = vpop.f32.mrf.mxu0
      %v2105 = vpop.f32.mrf.mxu0
      %v2106 = vadd.f32 0.0, %v2105
      %v2107 = vpop.f32.mrf.mxu0
      %2108 = vmatprep.mubr.bf16.mxu0 0
      %2109 = vmatmul.mubr.bf16.gmra.mxu0 %v2024
      %v2110 = vpop.f32.mrf.mxu0
      %v2111 = vadd.f32 0.0, %v2110
      %v2112 = vpop.f32.mrf.mxu0
      %v2113 = vpop.f32.mrf.mxu0
      %v2114 = vadd.f32 0.0, %v2113
      %v2115 = vpop.f32.mrf.mxu0
      %2116 = vmatprep.mubr.bf16.mxu0 0
      %2117 = vmatmul.mubr.bf16.gmra.mxu0 %v2027
      %v2118 = vpop.f32.mrf.mxu0
      %v2119 = vadd.f32 0.0, %v2118
      %v2120 = vpop.f32.mrf.mxu0
      %v2121 = vpop.f32.mrf.mxu0
      %v2122 = vadd.f32 0.0, %v2121
      %v2123 = vpop.f32.mrf.mxu0
      %2124 = vmatprep.mubr.bf16.mxu0 0
      %2125 = vmatmul.mubr.bf16.gmra.mxu0 %v2030
      %v2126 = vpop.f32.mrf.mxu0
      %v2127 = vadd.f32 0.0, %v2126
      %v2128 = vpop.f32.mrf.mxu0
      %v2129 = vpop.f32.mrf.mxu0
      %v2130 = vadd.f32 0.0, %v2129
      %v2131 = vpop.f32.mrf.mxu0
      %2132 = vmatprep.mubr.bf16.mxu0 0
      %2133 = vmatmul.mubr.bf16.gmra.mxu0 %v2033
      %v2134 = vpop.f32.mrf.mxu0
      %v2135 = vadd.f32 0.0, %v2134
      %v2136 = vpop.f32.mrf.mxu0
      %v2137 = vpop.f32.mrf.mxu0
      %v2138 = vadd.f32 0.0, %v2137
      %v2139 = vpop.f32.mrf.mxu0
      %2140 = vmatprep.mubr.bf16.mxu0 0
      %2141 = vmatmul.mubr.bf16.gmra.mxu0 %v2036
      %v2142 = vpop.f32.mrf.mxu0
      %v2143 = vadd.f32 0.0, %v2142
      %v2144 = vpop.f32.mrf.mxu0
      %v2145 = vpop.f32.mrf.mxu0
      %v2146 = vadd.f32 0.0, %v2145
      %v2147 = vpop.f32.mrf.mxu0
      %2148 = vmatprep.mubr.bf16.mxu0 0
      %2149 = vmatmul.mubr.bf16.gmra.mxu0 %v2039
      %v2150 = vpop.f32.mrf.mxu0
      %v2151 = vadd.f32 0.0, %v2150
      %v2152 = vpop.f32.mrf.mxu0
      %v2153 = vpop.f32.mrf.mxu0
      %v2154 = vadd.f32 0.0, %v2153
      %v2155 = vpop.f32.mrf.mxu0
      %2156 = vmatprep.mubr.bf16.mxu0 0
      %2157 = vmatmul.mubr.bf16.gmra.mxu0 %v2042
      %v2158 = vpop.f32.mrf.mxu0
      %v2159 = vadd.f32 0.0, %v2158
      %v2160 = vpop.f32.mrf.mxu0
      %v2161 = vpop.f32.mrf.mxu0
      %v2162 = vadd.f32 0.0, %v2161
      %v2163 = vpop.f32.mrf.mxu0
      %2164 = vmatprep.mubr.bf16.mxu0 0
      %2165 = vmatmul.mubr.bf16.gmra.mxu0 %v2045
      %v2166 = vpop.f32.mrf.mxu0
      %v2167 = vadd.f32 0.0, %v2166
      %v2168 = vpop.f32.mrf.mxu0
      %v2169 = vpop.f32.mrf.mxu0
      %v2170 = vadd.f32 0.0, %v2169
      %v2171 = vpop.f32.mrf.mxu0
      %2172 = vmatprep.mubr.bf16.mxu0 0
      %2173 = vmatmul.mubr.bf16.gmra.mxu0 %v2048
      %v2174 = vpop.f32.mrf.mxu0
      %v2175 = vadd.f32 0.0, %v2174
      %v2176 = vpop.f32.mrf.mxu0
      %v2177 = vpop.f32.mrf.mxu0
      %v2178 = vadd.f32 0.0, %v2177
      %v2179 = vpop.f32.mrf.mxu0
      %2180 = vmatprep.mubr.bf16.mxu0 0
      %2181 = vmatmul.mubr.bf16.gmra.mxu0 %v2051
      %v2182 = vpop.f32.mrf.mxu0
      %v2183 = vadd.f32 0.0, %v2182
      %v2184 = vpop.f32.mrf.mxu0
      %v2185 = vpop.f32.mrf.mxu0
      %v2186 = vadd.f32 0.0, %v2185
      %v2187 = vpop.f32.mrf.mxu0
      %2188 = vmatprep.mubr.bf16.mxu0 0
      %2189 = vmatmul.mubr.bf16.gmra.mxu0 %v2054
      %v2190 = vpop.f32.mrf.mxu0
      %v2191 = vadd.f32 0.0, %v2190
      %v2192 = vpop.f32.mrf.mxu0
      %v2193 = vpop.f32.mrf.mxu0
      %v2194 = vadd.f32 0.0, %v2193
      %v2195 = vpop.f32.mrf.mxu0
      %2196 = vmatprep.mubr.bf16.mxu0 0
      %2197 = vmatmul.mubr.bf16.gmra.mxu0 %v2057
      %v2198 = vpop.f32.mrf.mxu0
      %v2199 = vadd.f32 0.0, %v2198
      %v2200 = vpop.f32.mrf.mxu0
      %v2201 = vpop.f32.mrf.mxu0
      %v2202 = vadd.f32 0.0, %v2201
      %v2203 = vpop.f32.mrf.mxu0
      %2204 = vmatprep.mubr.bf16.mxu0 0
      %2205 = vmatmul.mubr.bf16.gmra.mxu0 %v2060
      %v2206 = vpop.f32.mrf.mxu0
      %v2207 = vadd.f32 0.0, %v2206
      %v2208 = vpop.f32.mrf.mxu0
      %v2209 = vpop.f32.mrf.mxu0
      %v2210 = vadd.f32 0.0, %v2209
      %v2211 = vpop.f32.mrf.mxu0
      %2212 = vmatprep.mubr.bf16.mxu0 0
      %2213 = vmatmul.mubr.bf16.gmra.mxu0 %v2063
      %v2214 = vpop.f32.mrf.mxu0
      %v2215 = vadd.f32 0.0, %v2214
      %v2216 = vpop.f32.mrf.mxu0
      %v2217 = vpop.f32.mrf.mxu0
      %v2218 = vadd.f32 0.0, %v2217
      %v2219 = vpop.f32.mrf.mxu0
      %2220 = vmatprep.mubr.bf16.mxu0 0
      %2221 = vmatmul.mubr.bf16.gmra.mxu0 %v2066
      %v2222 = vpop.f32.mrf.mxu0
      %v2223 = vadd.f32 0.0, %v2222
      %v2224 = vpop.f32.mrf.mxu0
      %v2225 = vpop.f32.mrf.mxu0
      %v2226 = vadd.f32 0.0, %v2225
      %v2227 = vpop.f32.mrf.mxu0
      %2228 = vdwg.mxu0
      %v2229 = vadd.f32 %v1867, %v2103
      %v2230 = vadd.f32 %v1868, %v2106
      %v2231 = vadd.f32 %v1869, %v2111
      %v2232 = vadd.f32 %v1870, %v2114
      %v2233 = vadd.f32 %v1871, %v2119
      %v2234 = vadd.f32 %v1872, %v2122
      %v2235 = vadd.f32 %v1873, %v2127
      %v2236 = vadd.f32 %v1874, %v2130
      %v2237 = vadd.f32 %v1875, %v2135
      %v2238 = vadd.f32 %v1876, %v2138
      %v2239 = vadd.f32 %v1877, %v2143
      %v2240 = vadd.f32 %v1878, %v2146
      %v2241 = vadd.f32 %v1879, %v2151
      %v2242 = vadd.f32 %v1880, %v2154
      %v2243 = vadd.f32 %v1881, %v2159
      %v2244 = vadd.f32 %v1882, %v2162
      %v2245 = vadd.f32 %v1883, %v2167
      %v2246 = vadd.f32 %v1884, %v2170
      %v2247 = vadd.f32 %v1885, %v2175
      %v2248 = vadd.f32 %v1886, %v2178
      %v2249 = vadd.f32 %v1887, %v2183
      %v2250 = vadd.f32 %v1888, %v2186
      %v2251 = vadd.f32 %v1889, %v2191
      %v2252 = vadd.f32 %v1890, %v2194
      %v2253 = vadd.f32 %v1891, %v2199
      %v2254 = vadd.f32 %v1892, %v2202
      %v2255 = vadd.f32 %v1893, %v2207
      %v2256 = vadd.f32 %v1894, %v2210
      %v2257 = vadd.f32 %v1895, %v2215
      %v2258 = vadd.f32 %v1896, %v2218
      %v2259 = vadd.f32 %v1897, %v2223
      %v2260 = vadd.f32 %v1898, %v2226
      %v2261 = vld [vmem:[%s10] sm:$0x1]
      %v2263 = vlaneseq
      %v2264 = vshrl.u32 %v2263, 7
      %v2265 = vsub.s32 0, %v2264
      %v2266 = vrot.slane %v2261, %v2265
      %v2268 = vadd.f32 %v2229, %v2266
      %v2269 = vadd.f32 %v2230, %v2266
      %v2270 = vadd.f32 %v2231, %v2266
      %v2271 = vadd.f32 %v2232, %v2266
      %v2272 = vadd.f32 %v2233, %v2266
      %v2273 = vadd.f32 %v2234, %v2266
      %v2274 = vadd.f32 %v2235, %v2266
      %v2275 = vadd.f32 %v2236, %v2266
      %v2276 = vadd.f32 %v2237, %v2266
      %v2277 = vadd.f32 %v2238, %v2266
      %v2278 = vadd.f32 %v2239, %v2266
      %v2279 = vadd.f32 %v2240, %v2266
      %v2280 = vadd.f32 %v2241, %v2266
      %v2281 = vadd.f32 %v2242, %v2266
      %v2282 = vadd.f32 %v2243, %v2266
      %v2283 = vadd.f32 %v2244, %v2266
      %v2284 = vadd.f32 %v2245, %v2266
      %v2285 = vadd.f32 %v2246, %v2266
      %v2286 = vadd.f32 %v2247, %v2266
      %v2287 = vadd.f32 %v2248, %v2266
      %v2288 = vadd.f32 %v2249, %v2266
      %v2289 = vadd.f32 %v2250, %v2266
      %v2290 = vadd.f32 %v2251, %v2266
      %v2291 = vadd.f32 %v2252, %v2266
      %v2292 = vadd.f32 %v2253, %v2266
      %v2293 = vadd.f32 %v2254, %v2266
      %v2294 = vadd.f32 %v2255, %v2266
      %v2295 = vadd.f32 %v2256, %v2266
      %v2296 = vadd.f32 %v2257, %v2266
      %v2297 = vadd.f32 %v2258, %v2266
      %v2298 = vadd.f32 %v2259, %v2266
      %v2299 = vadd.f32 %v2260, %v2266
      %v2300 = vmax.f32 %v2268, 0.0
      %v2301 = vmax.f32 %v2269, 0.0
      %v2302 = vmax.f32 %v2270, 0.0
      %v2303 = vmax.f32 %v2271, 0.0
      %v2304 = vmax.f32 %v2272, 0.0
      %v2305 = vmax.f32 %v2273, 0.0
      %v2306 = vmax.f32 %v2274, 0.0
      %v2307 = vmax.f32 %v2275, 0.0
      %v2308 = vmax.f32 %v2276, 0.0
      %v2309 = vmax.f32 %v2277, 0.0
      %v2310 = vmax.f32 %v2278, 0.0
      %v2311 = vmax.f32 %v2279, 0.0
      %v2312 = vmax.f32 %v2280, 0.0
      %v2313 = vmax.f32 %v2281, 0.0
      %v2314 = vmax.f32 %v2282, 0.0
      %v2315 = vmax.f32 %v2283, 0.0
      %v2316 = vmax.f32 %v2284, 0.0
      %v2317 = vmax.f32 %v2285, 0.0
      %v2318 = vmax.f32 %v2286, 0.0
      %v2319 = vmax.f32 %v2287, 0.0
      %v2320 = vmax.f32 %v2288, 0.0
      %v2321 = vmax.f32 %v2289, 0.0
      %v2322 = vmax.f32 %v2290, 0.0
      %v2323 = vmax.f32 %v2291, 0.0
      %v2324 = vmax.f32 %v2292, 0.0
      %v2325 = vmax.f32 %v2293, 0.0
      %v2326 = vmax.f32 %v2294, 0.0
      %v2327 = vmax.f32 %v2295, 0.0
      %v2328 = vmax.f32 %v2296, 0.0
      %v2329 = vmax.f32 %v2297, 0.0
      %v2330 = vmax.f32 %v2298, 0.0
      %v2331 = vmax.f32 %v2299, 0.0
      %v2332 = vpack.c.bf16 %v2301, %v2300
      %v2333 = vpack.c.bf16 %v2303, %v2302
      %v2334 = vpack.c.bf16 %v2305, %v2304
      %v2335 = vpack.c.bf16 %v2307, %v2306
      %v2336 = vpack.c.bf16 %v2309, %v2308
      %v2337 = vpack.c.bf16 %v2311, %v2310
      %v2338 = vpack.c.bf16 %v2313, %v2312
      %v2339 = vpack.c.bf16 %v2315, %v2314
      %v2340 = vpack.c.bf16 %v2317, %v2316
      %v2341 = vpack.c.bf16 %v2319, %v2318
      %v2342 = vpack.c.bf16 %v2321, %v2320
      %v2343 = vpack.c.bf16 %v2323, %v2322
      %v2344 = vpack.c.bf16 %v2325, %v2324
      %v2345 = vpack.c.bf16 %v2327, %v2326
      %v2346 = vpack.c.bf16 %v2329, %v2328
      %v2347 = vpack.c.bf16 %v2331, %v2330
      %v2348 = vld [vmem:[%s11] sm:$0xf]
      %v2349 = vld [vmem:[%s12] sm:$0x1]
      %v2351 = vlaneseq
      %v2352 = vshrl.u32 %v2351, 7
      %v2353 = vsub.s32 0, %v2352
      %v2354 = vrot.slane %v2349, %v2353
      %vm2356 = vcmask 64512
      %v2358 = vsel %vm2356, %v2332, 0
      %v2361 = vsel %vm2356, %v2333, 0
      %v2364 = vsel %vm2356, %v2334, 0
      %v2367 = vsel %vm2356, %v2335, 0
      %v2370 = vsel %vm2356, %v2336, 0
      %v2373 = vsel %vm2356, %v2337, 0
      %v2376 = vsel %vm2356, %v2338, 0
      %v2379 = vsel %vm2356, %v2339, 0
      %v2382 = vsel %vm2356, %v2340, 0
      %v2385 = vsel %vm2356, %v2341, 0
      %v2388 = vsel %vm2356, %v2342, 0
      %v2391 = vsel %vm2356, %v2343, 0
      %v2394 = vsel %vm2356, %v2344, 0
      %v2397 = vsel %vm2356, %v2345, 0
      %v2400 = vsel %vm2356, %v2346, 0
      %v2403 = vsel %vm2356, %v2347, 0
      %vm2405 = vcmask 1043456
      %v2407 = vsel %vm2405, %v2348, 0
      %2409 = vmatprep.subr.bf16.mxu0 0
      %2410 = vmatpush1.bf16.msra.mxu0 0
      %2411 = vmatprep.subr.bf16.mxu0 0
      %2412 = vmatpush1.bf16.msra.mxu0 0
      %2413 = vmatprep.subr.bf16.mxu0 0
      %2414 = vmatpush1.bf16.msra.mxu0 0
      %2415 = vmatprep.subr.bf16.mxu0 0
      %2416 = vmatpush1.bf16.msra.mxu0 0
      %2417 = vmatprep.subr.bf16.mxu0 0
      %2418 = vmatpush1.bf16.msra.mxu0 0
      %2419 = vmatprep.subr.bf16.mxu0 0
      %2420 = vmatpush1.bf16.msra.mxu0 0
      %2421 = vmatprep.subr.bf16.mxu0 0
      %2422 = vmatpush1.bf16.msra.mxu0 0
      %2423 = vmatprep.subr.bf16.mxu0 0
      %2424 = vmatpush1.bf16.msra.mxu0 %v2407
      %2425 = vmatprep.subr.bf16.mxu0 0
      %2426 = vmatpush2.bf16.msra.mxu0 0
      %2427 = vmatprep.subr.bf16.mxu0 0
      %2428 = vmatpush2.bf16.msra.mxu0 0
      %2429 = vmatprep.subr.bf16.mxu0 0
      %2430 = vmatpush2.bf16.msra.mxu0 0
      %2431 = vmatprep.subr.bf16.mxu0 0
      %2432 = vmatpush2.bf16.msra.mxu0 0
      %2433 = vmatprep.subr.bf16.mxu0 0
      %2434 = vmatpush2.bf16.msra.mxu0 0
      %2435 = vmatprep.subr.bf16.mxu0 0
      %2436 = vmatpush2.bf16.msra.mxu0 0
      %2437 = vmatprep.subr.bf16.mxu0 0
      %2438 = vmatpush2.bf16.msra.mxu0 0
      %2439 = vmatprep.subr.bf16.mxu0 0
      %2440 = vmatpush2.bf16.msra.mxu0 0
      %2441 = vmatprep.mubr.bf16.mxu0 0
      %2442 = vmatmul.mubr.bf16.gmra.mxu0 %v2358
      %v2443 = vpop.f32.mrf.mxu0
      %v2444 = vadd.f32 %v2354, %v2443
      %v2445 = vpop.f32.mrf.mxu0
      %v2446 = vpop.f32.mrf.mxu0
      %v2447 = vadd.f32 %v2354, %v2446
      %v2448 = vpop.f32.mrf.mxu0
      %2449 = vmatprep.mubr.bf16.mxu0 0
      %2450 = vmatmul.mubr.bf16.gmra.mxu0 %v2361
      %v2451 = vpop.f32.mrf.mxu0
      %v2452 = vadd.f32 %v2354, %v2451
      %v2453 = vpop.f32.mrf.mxu0
      %v2454 = vpop.f32.mrf.mxu0
      %v2455 = vadd.f32 %v2354, %v2454
      %v2456 = vpop.f32.mrf.mxu0
      %2457 = vmatprep.mubr.bf16.mxu0 0
      %2458 = vmatmul.mubr.bf16.gmra.mxu0 %v2364
      %v2459 = vpop.f32.mrf.mxu0
      %v2460 = vadd.f32 %v2354, %v2459
      %v2461 = vpop.f32.mrf.mxu0
      %v2462 = vpop.f32.mrf.mxu0
      %v2463 = vadd.f32 %v2354, %v2462
      %v2464 = vpop.f32.mrf.mxu0
      %2465 = vmatprep.mubr.bf16.mxu0 0
      %2466 = vmatmul.mubr.bf16.gmra.mxu0 %v2367
      %v2467 = vpop.f32.mrf.mxu0
      %v2468 = vadd.f32 %v2354, %v2467
      %v2469 = vpop.f32.mrf.mxu0
      %v2470 = vpop.f32.mrf.mxu0
      %v2471 = vadd.f32 %v2354, %v2470
      %v2472 = vpop.f32.mrf.mxu0
      %2473 = vmatprep.mubr.bf16.mxu0 0
      %2474 = vmatmul.mubr.bf16.gmra.mxu0 %v2370
      %v2475 = vpop.f32.mrf.mxu0
      %v2476 = vadd.f32 %v2354, %v2475
      %v2477 = vpop.f32.mrf.mxu0
      %v2478 = vpop.f32.mrf.mxu0
      %v2479 = vadd.f32 %v2354, %v2478
      %v2480 = vpop.f32.mrf.mxu0
      %2481 = vmatprep.mubr.bf16.mxu0 0
      %2482 = vmatmul.mubr.bf16.gmra.mxu0 %v2373
      %v2483 = vpop.f32.mrf.mxu0
      %v2484 = vadd.f32 %v2354, %v2483
      %v2485 = vpop.f32.mrf.mxu0
      %v2486 = vpop.f32.mrf.mxu0
      %v2487 = vadd.f32 %v2354, %v2486
      %v2488 = vpop.f32.mrf.mxu0
      %2489 = vmatprep.mubr.bf16.mxu0 0
      %2490 = vmatmul.mubr.bf16.gmra.mxu0 %v2376
      %v2491 = vpop.f32.mrf.mxu0
      %v2492 = vadd.f32 %v2354, %v2491
      %v2493 = vpop.f32.mrf.mxu0
      %v2494 = vpop.f32.mrf.mxu0
      %v2495 = vadd.f32 %v2354, %v2494
      %v2496 = vpop.f32.mrf.mxu0
      %2497 = vmatprep.mubr.bf16.mxu0 0
      %2498 = vmatmul.mubr.bf16.gmra.mxu0 %v2379
      %v2499 = vpop.f32.mrf.mxu0
      %v2500 = vadd.f32 %v2354, %v2499
      %v2501 = vpop.f32.mrf.mxu0
      %v2502 = vpop.f32.mrf.mxu0
      %v2503 = vadd.f32 %v2354, %v2502
      %v2504 = vpop.f32.mrf.mxu0
      %2505 = vmatprep.mubr.bf16.mxu0 0
      %2506 = vmatmul.mubr.bf16.gmra.mxu0 %v2382
      %v2507 = vpop.f32.mrf.mxu0
      %v2508 = vadd.f32 %v2354, %v2507
      %v2509 = vpop.f32.mrf.mxu0
      %v2510 = vpop.f32.mrf.mxu0
      %v2511 = vadd.f32 %v2354, %v2510
      %v2512 = vpop.f32.mrf.mxu0
      %2513 = vmatprep.mubr.bf16.mxu0 0
      %2514 = vmatmul.mubr.bf16.gmra.mxu0 %v2385
      %v2515 = vpop.f32.mrf.mxu0
      %v2516 = vadd.f32 %v2354, %v2515
      %v2517 = vpop.f32.mrf.mxu0
      %v2518 = vpop.f32.mrf.mxu0
      %v2519 = vadd.f32 %v2354, %v2518
      %v2520 = vpop.f32.mrf.mxu0
      %2521 = vmatprep.mubr.bf16.mxu0 0
      %2522 = vmatmul.mubr.bf16.gmra.mxu0 %v2388
      %v2523 = vpop.f32.mrf.mxu0
      %v2524 = vadd.f32 %v2354, %v2523
      %v2525 = vpop.f32.mrf.mxu0
      %v2526 = vpop.f32.mrf.mxu0
      %v2527 = vadd.f32 %v2354, %v2526
      %v2528 = vpop.f32.mrf.mxu0
      %2529 = vmatprep.mubr.bf16.mxu0 0
      %2530 = vmatmul.mubr.bf16.gmra.mxu0 %v2391
      %v2531 = vpop.f32.mrf.mxu0
      %v2532 = vadd.f32 %v2354, %v2531
      %v2533 = vpop.f32.mrf.mxu0
      %v2534 = vpop.f32.mrf.mxu0
      %v2535 = vadd.f32 %v2354, %v2534
      %v2536 = vpop.f32.mrf.mxu0
      %2537 = vmatprep.mubr.bf16.mxu0 0
      %2538 = vmatmul.mubr.bf16.gmra.mxu0 %v2394
      %v2539 = vpop.f32.mrf.mxu0
      %v2540 = vadd.f32 %v2354, %v2539
      %v2541 = vpop.f32.mrf.mxu0
      %v2542 = vpop.f32.mrf.mxu0
      %v2543 = vadd.f32 %v2354, %v2542
      %v2544 = vpop.f32.mrf.mxu0
      %2545 = vmatprep.mubr.bf16.mxu0 0
      %2546 = vmatmul.mubr.bf16.gmra.mxu0 %v2397
      %v2547 = vpop.f32.mrf.mxu0
      %v2548 = vadd.f32 %v2354, %v2547
      %v2549 = vpop.f32.mrf.mxu0
      %v2550 = vpop.f32.mrf.mxu0
      %v2551 = vadd.f32 %v2354, %v2550
      %v2552 = vpop.f32.mrf.mxu0
      %2553 = vmatprep.mubr.bf16.mxu0 0
      %2554 = vmatmul.mubr.bf16.gmra.mxu0 %v2400
      %v2555 = vpop.f32.mrf.mxu0
      %v2556 = vadd.f32 %v2354, %v2555
      %v2557 = vpop.f32.mrf.mxu0
      %v2558 = vpop.f32.mrf.mxu0
      %v2559 = vadd.f32 %v2354, %v2558
      %v2560 = vpop.f32.mrf.mxu0
      %2561 = vmatprep.mubr.bf16.mxu0 0
      %2562 = vmatmul.mubr.bf16.gmra.mxu0 %v2403
      %v2563 = vpop.f32.mrf.mxu0
      %v2564 = vadd.f32 %v2354, %v2563
      %v2565 = vpop.f32.mrf.mxu0
      %v2566 = vpop.f32.mrf.mxu0
      %v2567 = vadd.f32 %v2354, %v2566
      %v2568 = vpop.f32.mrf.mxu0
      %2569 = vdwg.mxu0
      %v2570 = vpack.c.bf16 %v2447, %v2444
      %v2571 = vpack.c.bf16 %v2455, %v2452
      %v2572 = vpack.c.bf16 %v2463, %v2460
      %v2573 = vpack.c.bf16 %v2471, %v2468
      %v2574 = vpack.c.bf16 %v2479, %v2476
      %v2575 = vpack.c.bf16 %v2487, %v2484
      %v2576 = vpack.c.bf16 %v2495, %v2492
      %v2577 = vpack.c.bf16 %v2503, %v2500
      %v2578 = vpack.c.bf16 %v2511, %v2508
      %v2579 = vpack.c.bf16 %v2519, %v2516
      %v2580 = vpack.c.bf16 %v2527, %v2524
      %v2581 = vpack.c.bf16 %v2535, %v2532
      %v2582 = vpack.c.bf16 %v2543, %v2540
      %v2583 = vpack.c.bf16 %v2551, %v2548
      %v2584 = vpack.c.bf16 %v2559, %v2556
      %v2585 = vpack.c.bf16 %v2567, %v2564
      %v2602 = vunpack.c.l.b16 %v2570
      %v2603 = vunpack.c.h.b16 %v2570
      %v2604 = vunpack.c.l.b16 %v2571
      %v2605 = vunpack.c.h.b16 %v2571
      %v2606 = vunpack.c.l.b16 %v2572
      %v2607 = vunpack.c.h.b16 %v2572
      %v2608 = vunpack.c.l.b16 %v2573
      %v2609 = vunpack.c.h.b16 %v2573
      %v2610 = vunpack.c.l.b16 %v2574
      %v2611 = vunpack.c.h.b16 %v2574
      %v2612 = vunpack.c.l.b16 %v2575
      %v2613 = vunpack.c.h.b16 %v2575
      %v2614 = vunpack.c.l.b16 %v2576
      %v2615 = vunpack.c.h.b16 %v2576
      %v2616 = vunpack.c.l.b16 %v2577
      %v2617 = vunpack.c.h.b16 %v2577
      %v2618 = vunpack.c.l.b16 %v2578
      %v2619 = vunpack.c.h.b16 %v2578
      %v2620 = vunpack.c.l.b16 %v2579
      %v2621 = vunpack.c.h.b16 %v2579
      %v2622 = vunpack.c.l.b16 %v2580
      %v2623 = vunpack.c.h.b16 %v2580
      %v2624 = vunpack.c.l.b16 %v2581
      %v2625 = vunpack.c.h.b16 %v2581
      %v2626 = vunpack.c.l.b16 %v2582
      %v2627 = vunpack.c.h.b16 %v2582
      %v2628 = vunpack.c.l.b16 %v2583
      %v2629 = vunpack.c.h.b16 %v2583
      %v2630 = vunpack.c.l.b16 %v2584
      %v2631 = vunpack.c.h.b16 %v2584
      %v2632 = vunpack.c.l.b16 %v2585
      %v2633 = vunpack.c.h.b16 %v2585
      %v2634 = vpack.c.b16 %v2602, %v2602
      %v2635 = vpack.c.b16 %v2603, %v2603
      %v2636 = vpack.c.b16 %v2604, %v2604
      %v2637 = vpack.c.b16 %v2605, %v2605
      %v2638 = vpack.c.b16 %v2606, %v2606
      %v2639 = vpack.c.b16 %v2607, %v2607
      %v2640 = vpack.c.b16 %v2608, %v2608
      %v2641 = vpack.c.b16 %v2609, %v2609
      %v2642 = vpack.c.b16 %v2610, %v2610
      %v2643 = vpack.c.b16 %v2611, %v2611
      %v2644 = vpack.c.b16 %v2612, %v2612
      %v2645 = vpack.c.b16 %v2613, %v2613
      %v2646 = vpack.c.b16 %v2614, %v2614
      %v2647 = vpack.c.b16 %v2615, %v2615
      %v2648 = vpack.c.b16 %v2616, %v2616
      %v2649 = vpack.c.b16 %v2617, %v2617
      %v2650 = vpack.c.b16 %v2618, %v2618
      %v2651 = vpack.c.b16 %v2619, %v2619
      %v2652 = vpack.c.b16 %v2620, %v2620
      %v2653 = vpack.c.b16 %v2621, %v2621
      %v2654 = vpack.c.b16 %v2622, %v2622
      %v2655 = vpack.c.b16 %v2623, %v2623
      %v2656 = vpack.c.b16 %v2624, %v2624
      %v2657 = vpack.c.b16 %v2625, %v2625
      %v2658 = vpack.c.b16 %v2626, %v2626
      %v2659 = vpack.c.b16 %v2627, %v2627
      %v2660 = vpack.c.b16 %v2628, %v2628
      %v2661 = vpack.c.b16 %v2629, %v2629
      %v2662 = vpack.c.b16 %v2630, %v2630
      %v2663 = vpack.c.b16 %v2631, %v2631
      %v2664 = vpack.c.b16 %v2632, %v2632
      %v2665 = vpack.c.b16 %v2633, %v2633
      %2698 = vst [vmem:[%s530] sm:$0xf] %v2634
      %2699 = vst [vmem:[%s530 + $0x4] sm:$0xf] %v2635
      %2700 = vst [vmem:[%s530 + $0x8] sm:$0xf] %v2636
      %2701 = vst [vmem:[%s530 + $0xc] sm:$0xf] %v2637
      %2702 = vst [vmem:[%s530 + $0x10] sm:$0xf] %v2638
      %2703 = vst [vmem:[%s530 + $0x14] sm:$0xf] %v2639
      %2704 = vst [vmem:[%s530 + $0x18] sm:$0xf] %v2640
      %2705 = vst [vmem:[%s530 + $0x1c] sm:$0xf] %v2641
      %2706 = vst [vmem:[%s530 + $0x20] sm:$0xf] %v2642
      %2707 = vst [vmem:[%s530 + $0x24] sm:$0xf] %v2643
      %2708 = vst [vmem:[%s530 + $0x28] sm:$0xf] %v2644
      %2709 = vst [vmem:[%s530 + $0x2c] sm:$0xf] %v2645
      %2710 = vst [vmem:[%s530 + $0x30] sm:$0xf] %v2646
      %2711 = vst [vmem:[%s530 + $0x34] sm:$0xf] %v2647
      %2712 = vst [vmem:[%s530 + $0x38] sm:$0xf] %v2648
      %2713 = vst [vmem:[%s530 + $0x3c] sm:$0xf] %v2649
      %2714 = vst [vmem:[%s530 + $0x40] sm:$0xf] %v2650
      %2715 = vst [vmem:[%s530 + $0x44] sm:$0xf] %v2651
      %2716 = vst [vmem:[%s530 + $0x48] sm:$0xf] %v2652
      %2717 = vst [vmem:[%s530 + $0x4c] sm:$0xf] %v2653
      %2718 = vst [vmem:[%s530 + $0x50] sm:$0xf] %v2654
      %2719 = vst [vmem:[%s530 + $0x54] sm:$0xf] %v2655
      %2720 = vst [vmem:[%s530 + $0x58] sm:$0xf] %v2656
      %2721 = vst [vmem:[%s530 + $0x5c] sm:$0xf] %v2657
      %2722 = vst [vmem:[%s530 + $0x60] sm:$0xf] %v2658
      %2723 = vst [vmem:[%s530 + $0x64] sm:$0xf] %v2659
      %2724 = vst [vmem:[%s530 + $0x68] sm:$0xf] %v2660
      %2725 = vst [vmem:[%s530 + $0x6c] sm:$0xf] %v2661
      %2726 = vst [vmem:[%s530 + $0x70] sm:$0xf] %v2662
      %2727 = vst [vmem:[%s530 + $0x74] sm:$0xf] %v2663
      %2728 = vst [vmem:[%s530 + $0x78] sm:$0xf] %v2664
      %2729 = vst [vmem:[%s530 + $0x7c] sm:$0xf] %v2665
      %s2730 = smul.u32 32, %s24
      %p2731 = scmp.lt.s32.totalorder %s2730, 63
      %s2732 = scalar_select %p2731, %s2730, 63
      %s2733 = smul.addr %s2732, 4
      %s2734 = scalar_lea.vmem %s13, %s2733
      // Predicated region
      $region73: #{psp_module_forward.1} parent=71 // pred_check
        %p2735 = pneg %p340
      $region74: #{psp_module_forward.1} parent=71 // pred_check_branch
        %2737 = sbr.rel (%p2735) target = $region76
      $region75: #{psp_module_forward.1} parent=71 // pred_region
        %s2738 = smul.u32 32, %s24
      $region76: #{psp_module_forward.1} parent=71 // pred_fallthru
        _
    $region72: #{psp_module_forward.1} parent=5 // pred_fallthru
      _
    %p2739 = scmp.le.s32.totalorder 2, %s19
    // Predicated region
    $region77: #{psp_module_forward.1} parent=5 // pred_check
      %p2740 = pneg %p2739
    $region78: #{psp_module_forward.1} parent=5 // pred_check_branch
      %2742 = sbr.rel (%p2740) target = $region80
    $region79: #{psp_module_forward.1} parent=5 // pred_region
      %s2743 = ssub.s32 %s19, 2
      // Predicated region
      $region81: #{psp_module_forward.1} parent=79 // pred_check
        %p2744 = pneg %p346
      $region82: #{psp_module_forward.1} parent=79 // pred_check_branch
        %2746 = sbr.rel (%p2744) target = $region84
      $region83: #{psp_module_forward.1} parent=79 // pred_region
        %s2747 = smul.u32 32, %s25
        %p2748 = scmp.lt.s32.totalorder %s2747, 63
        %s2749 = scalar_select %p2748, %s2747, 63
        %s2750 = smul.addr %s2749, 4
        %s2751 = scalar_lea.vmem %s13, %s2750
      $region84: #{psp_module_forward.1} parent=79 // pred_fallthru
        _
    $region80: #{psp_module_forward.1} parent=5 // pred_fallthru
      _
  $region6: #{psp_module_forward.1} parent=0 // loop_footer
    %s23 = sadd.s32 1, %s19
  $region7: #{psp_module_forward.1} parent=0 // loop_footer_branch
    %18 = sbr.rel target = $region3
  $region8: #{psp_module_forward.1} parent=0 // loop_exit
    _

</llo_original>
